<compile_context>
chip_gen: v6e
topology: v6e:2x2x1
jax: 0.10.0
libtpu: 0.0.40
codegen_flags: <defaults>
</compile_context>

<pallas_src>
import jax
import jax.numpy as jnp
from jax import lax
from jax.experimental import pallas as pl
from jax.experimental.pallas import tpu as pltpu

INF = 100.0   # clamp bounds used by ParserModel.loss (codebase constants)
EPS = 1e-10

TYPES = ("statement", "metaconcept", "question")

# Small, module-consistent shapes.
B, T_IN, H, T_OUT, E, HD, VP = 2, 8, 32, 8, 32, 32, 32
VPP = 128            # vocab padded to a full lane width


# ----------------------------------------------------------------------------
# Pallas kernel: all three seq2seq forwards fused into one block-diagonal
# recurrence (encoder RNN + decoder RNN + log-softmax + NLL) in one call.
# ----------------------------------------------------------------------------
def _parser_kernel(enc_ref, mask_ref, temb_ref, gold_ref,
                   w_eih_ref, b_e_ref, w_ehh_ref,
                   w_dih_ref, b_d_ref, w_dhh_ref,
                   w_o_ref, b_o_ref,
                   end_ref, loss_ref,
                   d_scratch):
    b, t_in, _ = enc_ref.shape            # (B, T_IN, NT*H)
    _, t_out, _ = temb_ref.shape          # (B, T_OUT, NT*E)
    hf = w_ehh_ref.shape[-1]              # NT*HD  (fused hidden width)
    nt, tb, vpp = end_ref.shape           # (NT, B*T_OUT, 128)

    # ---- fused input projections: 2 matmuls cover all 3 types -------------
    xe = (jnp.dot(enc_ref[...].reshape(b * t_in, enc_ref.shape[-1]),
                  w_eih_ref[...], preferred_element_type=jnp.float32)
          + b_e_ref[...]).reshape(b, t_in, hf)
    xd = (jnp.dot(temb_ref[...].reshape(b * t_out, temb_ref.shape[-1]),
                  w_dih_ref[...], preferred_element_type=jnp.float32)
          + b_d_ref[...]).reshape(b, t_out, hf)

    keep = mask_ref[...]                  # (B, T_IN, NT*HD) — loaded ONCE
    w_ehh = w_ehh_ref[...]
    w_dhh = w_dhh_ref[...]

    # ---- fused encoder: ONE (B, NT*HD) @ (NT*HD, NT*HD) per timestep -------
    h = jnp.zeros((b, hf), jnp.float32)
    for t in range(t_in):                 # static unroll
        h_new = jnp.tanh(xe[:, t, :]
                         + jnp.dot(h, w_ehh,
                                   preferred_element_type=jnp.float32))
        h = h + keep[:, t, :] * (h_new - h)   # length mask, arithmetic form

    # ---- fused decoder (teacher forcing); stash hiddens for batched head ---
    d = h                                  # per-type blocks init from encoder
    for t in range(t_out):                # static unroll
        d = jnp.tanh(xd[:, t, :]
                     + jnp.dot(d, w_dhh,
                               preferred_element_type=jnp.float32))
        d_scratch[:, t, :] = d

    # ---- ONE lane-dense output head for all types: (16,96) @ (96, NT*128) --
    d_all = d_scratch[...].reshape(b * t_out, hf)
    logits = jnp.dot(d_all, w_o_ref[...],
                     preferred_element_type=jnp.float32) + b_o_ref[...]

    iota_v = lax.broadcasted_iota(jnp.int32, (tb, vpp), 1)
    inv_denom = 1.0 / float(b * (t_out - 1))
    ones11 = jnp.ones((1, 1), jnp.float32)

    for ti in range(nt):                  # static unroll; only head post-proc
        lg = logits[:, ti * vpp:(ti + 1) * vpp]      # 128-aligned lane slice
        mmax = jnp.max(lg, axis=-1, keepdims=True)
        lse = mmax + jnp.log(jnp.sum(jnp.exp(lg - mmax), axis=-1,
                                     keepdims=True))
        logp = lg - lse                               # log_softmax (padded
        end_ref[ti] = logp                            # cols contribute exp=0)

        # F.nll_loss(output[:, :-1].clamp(-INF, -EPS), target[:, 1:]) with
        # default mean reduction over B*(T_OUT-1) positions.  gold == -1 marks
        # the excluded last decoder position, so no extra time mask is needed.
        clamped = jnp.clip(logp, -INF, -EPS)
        sel = iota_v == gold_ref[ti]                  # (16,128) vs (16,1)
        nll = -jnp.sum(jnp.where(sel, clamped, 0.0))
        loss_ref[ti] = (nll * inv_denom) * ones11     # single (1,1) store


# ----------------------------------------------------------------------------
# Parameter init (deterministic, synthetic).
# ----------------------------------------------------------------------------
def init_model(key):
    params = {}
    for ti, t in enumerate(TYPES):
        k = jax.random.fold_in(key, ti)
        ks = jax.random.split(k, 6)
        params[t] = dict(
            emb=jax.random.normal(ks[0], (VP, E), jnp.float32) * 0.1,
            w_eih=jax.random.normal(ks[1], (H, HD), jnp.float32) / jnp.sqrt(H),
            w_ehh=jax.random.normal(ks[2], (HD, HD), jnp.float32) / jnp.sqrt(HD),
            b_e=jnp.zeros((1, HD), jnp.float32),
            w_dih=jax.random.normal(ks[3], (E, HD), jnp.float32) / jnp.sqrt(E),
            w_dhh=jax.random.normal(ks[4], (HD, HD), jnp.float32) / jnp.sqrt(HD),
            b_d=jnp.zeros((1, HD), jnp.float32),
            w_o=jax.random.normal(ks[5], (HD, VP), jnp.float32) / jnp.sqrt(HD),
            b_o=jnp.zeros((1, VP), jnp.float32),
        )
    return {
        "params": params,
        "word_entries": [f"w{i}" for i in range(VP)],
        "program_entries": [f"p{i}" for i in range(VP)],
    }


def check_entries(model_entries, input_entries):
    if list(model_entries) != list(input_entries):
        raise ValueError("entry mismatch between model and inputs")


# ----------------------------------------------------------------------------
# Forward wrapper: builds the fused (block-diagonal / concatenated) operands
# host-side, runs one pallas_call, unpacks per-type outputs.
# NOTE: the original's descending-length sort + unsort (pack_padded_sequence
# plumbing) is dropped -- the in-kernel length mask freezes h past each
# sequence's length and the NLL mean is batch-permutation invariant.
# ----------------------------------------------------------------------------
def parser_model_forward(model, inputs):
    params = model["params"]
    check_entries(model["word_entries"], inputs["info"]["word_entries"][0])
    check_entries(model["program_entries"], inputs["info"]["program_entries"][0])

    types_present = [t for t in TYPES if f"{t}_encoded" in inputs]
    if not types_present:
        return {}
    nt = len(types_present)

    enc_l, mask_l, temb_l, gold_l = [], [], [], []
    for t in types_present:
        lengths = jnp.asarray(inputs[f"{t}_length"], jnp.int32)
        enc = jnp.asarray(inputs[f"{t}_encoded"], jnp.float32)   # [B, T_IN, H]
        tgt = jnp.asarray(inputs[f"{t}_target"], jnp.int32)      # [B, T_OUT]

        mask = (jnp.arange(T_IN)[None, :] < lengths[:, None]
                ).astype(jnp.float32)                            # [B, T_IN]
        mask_l.append(jnp.broadcast_to(mask[:, :, None], (B, T_IN, HD)))
        enc_l.append(enc)
        temb_l.append(params[t]["emb"][tgt])                     # [B, T_OUT, E]
        # gold next-token ids: target[:, t+1]; last position = -1 (never
        # matches any vocab id -> excluded from the NLL, like output[:, :-1]).
        gold = jnp.concatenate(
            [tgt[:, 1:], jnp.full((tgt.shape[0], 1), -1, jnp.int32)], axis=1)
        gold_l.append(gold.reshape(B * T_OUT, 1))

    # Type-concatenated activations (feature-blocked) and block-diag weights.
    enc_cat = jnp.concatenate(enc_l, axis=-1)      # (B, T_IN,  nt*H)
    mask_cat = jnp.concatenate(mask_l, axis=-1)    # (B, T_IN,  nt*HD)
    temb_cat = jnp.concatenate(temb_l, axis=-1)    # (B, T_OUT, nt*E)
    gold = jnp.stack(gold_l)                       # (nt, B*T_OUT, 1)

    bd = jax.scipy.linalg.block_diag
    w_eih = bd(*[params[t]["w_eih"] for t in types_present])     # (nt*H, nt*HD)
    w_ehh = bd(*[params[t]["w_ehh"] for t in types_present])     # (nt*HD, nt*HD)
    w_dih = bd(*[params[t]["w_dih"] for t in types_present])     # (nt*E, nt*HD)
    w_dhh = bd(*[params[t]["w_dhh"] for t in types_present])     # (nt*HD, nt*HD)
    b_e = jnp.concatenate([params[t]["b_e"] for t in types_present], axis=1)
    b_d = jnp.concatenate([params[t]["b_d"] for t in types_present], axis=1)
    # Vocab padded to 128 lanes: zero weight columns, -1e9 bias -> exp()==0,
    # so the log-softmax over the real VP columns is unchanged.
    w_o = bd(*[jnp.pad(params[t]["w_o"], ((0, 0), (0, VPP - VP)))
               for t in types_present])                          # (nt*HD, nt*128)
    b_o = jnp.concatenate(
        [jnp.concatenate([params[t]["b_o"],
                          jnp.full((1, VPP - VP), -1e9, jnp.float32)], axis=1)
         for t in types_present], axis=1)                        # (1, nt*128)

    end_all, loss_all = pl.pallas_call(
        _parser_kernel,
        out_shape=(
            jax.ShapeDtypeStruct((nt, B * T_OUT, VPP), jnp.float32),
            jax.ShapeDtypeStruct((nt, 1, 1), jnp.float32),
        ),
        scratch_shapes=[pltpu.VMEM((B, T_OUT, nt * HD), jnp.float32)],
    )(enc_cat, mask_cat, temb_cat, gold,
      w_eih, b_e, w_ehh, w_dih, b_d, w_dhh, w_o, b_o)

    outputs = {}
    for ti, t in enumerate(types_present):
        end = end_all[ti].reshape(B, T_OUT, VPP)[:, :, :VP]      # strip padding
        outputs[f"{t}_end"] = end
        outputs[f"{t}_predicted"] = jnp.argmax(end, axis=-1)
        outputs[f"{t}_loss"] = loss_all[ti, 0, 0]
    return outputs


# ----------------------------------------------------------------------------
if __name__ == "__main__":
    key = jax.random.PRNGKey(0)
    pkey, dkey = jax.random.split(key)

    model = init_model(pkey)

    inputs = {
        "info": {
            "word_entries": [model["word_entries"]],
            "program_entries": [model["program_entries"]],
        }
    }
    for ti, t in enumerate(TYPES):
        k = jax.random.fold_in(dkey, ti)
        k1, k2, k3 = jax.random.split(k, 3)
        inputs[f"{t}_encoded"] = jax.random.normal(k1, (B, T_IN, H), jnp.float32)
        inputs[f"{t}_target"] = jax.random.randint(k2, (B, T_OUT), 0, VP,
                                                   dtype=jnp.int32)
        inputs[f"{t}_length"] = jax.random.randint(k3, (B,), 3, T_IN + 1,
                                                   dtype=jnp.int32)

    outputs = parser_model_forward(model, inputs)
    jax.block_until_ready(outputs)

    # Basic sanity on shapes/dtypes.
    for t in TYPES:
        assert outputs[f"{t}_end"].shape == (B, T_OUT, VP)
        assert outputs[f"{t}_predicted"].shape == (B, T_OUT)
        assert outputs[f"{t}_loss"].shape == ()
        assert bool(jnp.isfinite(outputs[f"{t}_loss"]))

    print("KERNEL_OK")
</pallas_src>

<mosaic_0001>
module attributes {stable_mosaic.version = 11 : i64} {
  func.func @_parser_kernel(%arg0: memref<2x8x96xf32, #tpu.memory_space<vmem>>, %arg1: memref<2x8x96xf32, #tpu.memory_space<vmem>>, %arg2: memref<2x8x96xf32, #tpu.memory_space<vmem>>, %arg3: memref<3x16x1xi32, #tpu.memory_space<vmem>>, %arg4: memref<96x96xf32, #tpu.memory_space<vmem>>, %arg5: memref<1x96xf32, #tpu.memory_space<vmem>>, %arg6: memref<96x96xf32, #tpu.memory_space<vmem>>, %arg7: memref<96x96xf32, #tpu.memory_space<vmem>>, %arg8: memref<1x96xf32, #tpu.memory_space<vmem>>, %arg9: memref<96x96xf32, #tpu.memory_space<vmem>>, %arg10: memref<96x384xf32, #tpu.memory_space<vmem>>, %arg11: memref<1x384xf32, #tpu.memory_space<vmem>>, %arg12: memref<3x16x128xf32, #tpu.memory_space<vmem>>, %arg13: memref<3x1x1xf32, #tpu.memory_space<vmem>>, %arg14: memref<2x8x96xf32, #tpu.memory_space<vmem>>) attributes {dimension_semantics = [], scalar_prefetch = 0 : i64, scratch_operands = 1 : i64, tpu.core_type = #tpu.core_type<tc>} {
    %c0 = arith.constant 0 : index
    %c0_0 = arith.constant 0 : index
    %c0_1 = arith.constant 0 : index
    %0 = vector.load %arg0[%c0, %c0_0, %c0_1] : memref<2x8x96xf32, #tpu.memory_space<vmem>>, vector<2x8x96xf32>
    %1 = vector.shape_cast %0 : vector<2x8x96xf32> to vector<16x96xf32>
    %c0_2 = arith.constant 0 : index
    %c0_3 = arith.constant 0 : index
    %2 = vector.load %arg4[%c0_2, %c0_3] : memref<96x96xf32, #tpu.memory_space<vmem>>, vector<96x96xf32>
    %cst = arith.constant dense<0.000000e+00> : vector<16x96xf32>
    %3 = tpu.matmul %1, %2, %cst {dimension_numbers = #tpu.dot_dimension_numbers<[1], [0], [0], [1], [0, 0, 1, 1], [], []>} : vector<16x96xf32>, vector<96x96xf32>, vector<16x96xf32> -> vector<16x96xf32>
    %c0_4 = arith.constant 0 : index
    %c0_5 = arith.constant 0 : index
    %4 = vector.load %arg5[%c0_4, %c0_5] : memref<1x96xf32, #tpu.memory_space<vmem>>, vector<1x96xf32>
    %5 = vector.broadcast %4 : vector<1x96xf32> to vector<16x96xf32>
    %6 = arith.addf %3, %5 : vector<16x96xf32>
    %7 = vector.shape_cast %6 : vector<16x96xf32> to vector<2x8x96xf32>
    %c0_6 = arith.constant 0 : index
    %c0_7 = arith.constant 0 : index
    %c0_8 = arith.constant 0 : index
    %8 = vector.load %arg2[%c0_6, %c0_7, %c0_8] : memref<2x8x96xf32, #tpu.memory_space<vmem>>, vector<2x8x96xf32>
    %9 = vector.shape_cast %8 : vector<2x8x96xf32> to vector<16x96xf32>
    %c0_9 = arith.constant 0 : index
    %c0_10 = arith.constant 0 : index
    %10 = vector.load %arg7[%c0_9, %c0_10] : memref<96x96xf32, #tpu.memory_space<vmem>>, vector<96x96xf32>
    %cst_11 = arith.constant dense<0.000000e+00> : vector<16x96xf32>
    %11 = tpu.matmul %9, %10, %cst_11 {dimension_numbers = #tpu.dot_dimension_numbers<[1], [0], [0], [1], [0, 0, 1, 1], [], []>} : vector<16x96xf32>, vector<96x96xf32>, vector<16x96xf32> -> vector<16x96xf32>
    %c0_12 = arith.constant 0 : index
    %c0_13 = arith.constant 0 : index
    %12 = vector.load %arg8[%c0_12, %c0_13] : memref<1x96xf32, #tpu.memory_space<vmem>>, vector<1x96xf32>
    %13 = vector.broadcast %12 : vector<1x96xf32> to vector<16x96xf32>
    %14 = arith.addf %11, %13 : vector<16x96xf32>
    %15 = vector.shape_cast %14 : vector<16x96xf32> to vector<2x8x96xf32>
    %c0_14 = arith.constant 0 : index
    %c0_15 = arith.constant 0 : index
    %c0_16 = arith.constant 0 : index
    %16 = vector.load %arg1[%c0_14, %c0_15, %c0_16] : memref<2x8x96xf32, #tpu.memory_space<vmem>>, vector<2x8x96xf32>
    %c0_17 = arith.constant 0 : index
    %c0_18 = arith.constant 0 : index
    %17 = vector.load %arg6[%c0_17, %c0_18] : memref<96x96xf32, #tpu.memory_space<vmem>>, vector<96x96xf32>
    %c0_19 = arith.constant 0 : index
    %c0_20 = arith.constant 0 : index
    %18 = vector.load %arg9[%c0_19, %c0_20] : memref<96x96xf32, #tpu.memory_space<vmem>>, vector<96x96xf32>
    %cst_21 = arith.constant 0.000000e+00 : f32
    %19 = vector.broadcast %cst_21 : f32 to vector<2x96xf32>
    %20 = vector.extract_strided_slice %7 {offsets = [0, 0, 0], sizes = [2, 1, 96], strides = [1, 1, 1]} : vector<2x8x96xf32> to vector<2x1x96xf32>
    %21 = vector.shape_cast %20 : vector<2x1x96xf32> to vector<2x96xf32>
    %cst_22 = arith.constant dense<0.000000e+00> : vector<2x96xf32>
    %22 = tpu.matmul %19, %17, %cst_22 {dimension_numbers = #tpu.dot_dimension_numbers<[1], [0], [0], [1], [0, 0, 1, 1], [], []>} : vector<2x96xf32>, vector<96x96xf32>, vector<2x96xf32> -> vector<2x96xf32>
    %23 = arith.addf %21, %22 : vector<2x96xf32>
    %24 = math.tanh %23 : vector<2x96xf32>
    %25 = vector.extract_strided_slice %16 {offsets = [0, 0, 0], sizes = [2, 1, 96], strides = [1, 1, 1]} : vector<2x8x96xf32> to vector<2x1x96xf32>
    %26 = vector.shape_cast %25 : vector<2x1x96xf32> to vector<2x96xf32>
    %27 = arith.subf %24, %19 : vector<2x96xf32>
    %28 = arith.mulf %26, %27 : vector<2x96xf32>
    %29 = arith.addf %19, %28 : vector<2x96xf32>
    %30 = vector.extract_strided_slice %7 {offsets = [0, 1, 0], sizes = [2, 1, 96], strides = [1, 1, 1]} : vector<2x8x96xf32> to vector<2x1x96xf32>
    %31 = vector.shape_cast %30 : vector<2x1x96xf32> to vector<2x96xf32>
    %cst_23 = arith.constant dense<0.000000e+00> : vector<2x96xf32>
    %32 = tpu.matmul %29, %17, %cst_23 {dimension_numbers = #tpu.dot_dimension_numbers<[1], [0], [0], [1], [0, 0, 1, 1], [], []>} : vector<2x96xf32>, vector<96x96xf32>, vector<2x96xf32> -> vector<2x96xf32>
    %33 = arith.addf %31, %32 : vector<2x96xf32>
    %34 = math.tanh %33 : vector<2x96xf32>
    %35 = vector.extract_strided_slice %16 {offsets = [0, 1, 0], sizes = [2, 1, 96], strides = [1, 1, 1]} : vector<2x8x96xf32> to vector<2x1x96xf32>
    %36 = vector.shape_cast %35 : vector<2x1x96xf32> to vector<2x96xf32>
    %37 = arith.subf %34, %29 : vector<2x96xf32>
    %38 = arith.mulf %36, %37 : vector<2x96xf32>
    %39 = arith.addf %29, %38 : vector<2x96xf32>
    %40 = vector.extract_strided_slice %7 {offsets = [0, 2, 0], sizes = [2, 1, 96], strides = [1, 1, 1]} : vector<2x8x96xf32> to vector<2x1x96xf32>
    %41 = vector.shape_cast %40 : vector<2x1x96xf32> to vector<2x96xf32>
    %cst_24 = arith.constant dense<0.000000e+00> : vector<2x96xf32>
    %42 = tpu.matmul %39, %17, %cst_24 {dimension_numbers = #tpu.dot_dimension_numbers<[1], [0], [0], [1], [0, 0, 1, 1], [], []>} : vector<2x96xf32>, vector<96x96xf32>, vector<2x96xf32> -> vector<2x96xf32>
    %43 = arith.addf %41, %42 : vector<2x96xf32>
    %44 = math.tanh %43 : vector<2x96xf32>
    %45 = vector.extract_strided_slice %16 {offsets = [0, 2, 0], sizes = [2, 1, 96], strides = [1, 1, 1]} : vector<2x8x96xf32> to vector<2x1x96xf32>
    %46 = vector.shape_cast %45 : vector<2x1x96xf32> to vector<2x96xf32>
    %47 = arith.subf %44, %39 : vector<2x96xf32>
    %48 = arith.mulf %46, %47 : vector<2x96xf32>
    %49 = arith.addf %39, %48 : vector<2x96xf32>
    %50 = vector.extract_strided_slice %7 {offsets = [0, 3, 0], sizes = [2, 1, 96], strides = [1, 1, 1]} : vector<2x8x96xf32> to vector<2x1x96xf32>
    %51 = vector.shape_cast %50 : vector<2x1x96xf32> to vector<2x96xf32>
    %cst_25 = arith.constant dense<0.000000e+00> : vector<2x96xf32>
    %52 = tpu.matmul %49, %17, %cst_25 {dimension_numbers = #tpu.dot_dimension_numbers<[1], [0], [0], [1], [0, 0, 1, 1], [], []>} : vector<2x96xf32>, vector<96x96xf32>, vector<2x96xf32> -> vector<2x96xf32>
    %53 = arith.addf %51, %52 : vector<2x96xf32>
    %54 = math.tanh %53 : vector<2x96xf32>
    %55 = vector.extract_strided_slice %16 {offsets = [0, 3, 0], sizes = [2, 1, 96], strides = [1, 1, 1]} : vector<2x8x96xf32> to vector<2x1x96xf32>
    %56 = vector.shape_cast %55 : vector<2x1x96xf32> to vector<2x96xf32>
    %57 = arith.subf %54, %49 : vector<2x96xf32>
    %58 = arith.mulf %56, %57 : vector<2x96xf32>
    %59 = arith.addf %49, %58 : vector<2x96xf32>
    %60 = vector.extract_strided_slice %7 {offsets = [0, 4, 0], sizes = [2, 1, 96], strides = [1, 1, 1]} : vector<2x8x96xf32> to vector<2x1x96xf32>
    %61 = vector.shape_cast %60 : vector<2x1x96xf32> to vector<2x96xf32>
    %cst_26 = arith.constant dense<0.000000e+00> : vector<2x96xf32>
    %62 = tpu.matmul %59, %17, %cst_26 {dimension_numbers = #tpu.dot_dimension_numbers<[1], [0], [0], [1], [0, 0, 1, 1], [], []>} : vector<2x96xf32>, vector<96x96xf32>, vector<2x96xf32> -> vector<2x96xf32>
    %63 = arith.addf %61, %62 : vector<2x96xf32>
    %64 = math.tanh %63 : vector<2x96xf32>
    %65 = vector.extract_strided_slice %16 {offsets = [0, 4, 0], sizes = [2, 1, 96], strides = [1, 1, 1]} : vector<2x8x96xf32> to vector<2x1x96xf32>
    %66 = vector.shape_cast %65 : vector<2x1x96xf32> to vector<2x96xf32>
    %67 = arith.subf %64, %59 : vector<2x96xf32>
    %68 = arith.mulf %66, %67 : vector<2x96xf32>
    %69 = arith.addf %59, %68 : vector<2x96xf32>
    %70 = vector.extract_strided_slice %7 {offsets = [0, 5, 0], sizes = [2, 1, 96], strides = [1, 1, 1]} : vector<2x8x96xf32> to vector<2x1x96xf32>
    %71 = vector.shape_cast %70 : vector<2x1x96xf32> to vector<2x96xf32>
    %cst_27 = arith.constant dense<0.000000e+00> : vector<2x96xf32>
    %72 = tpu.matmul %69, %17, %cst_27 {dimension_numbers = #tpu.dot_dimension_numbers<[1], [0], [0], [1], [0, 0, 1, 1], [], []>} : vector<2x96xf32>, vector<96x96xf32>, vector<2x96xf32> -> vector<2x96xf32>
    %73 = arith.addf %71, %72 : vector<2x96xf32>
    %74 = math.tanh %73 : vector<2x96xf32>
    %75 = vector.extract_strided_slice %16 {offsets = [0, 5, 0], sizes = [2, 1, 96], strides = [1, 1, 1]} : vector<2x8x96xf32> to vector<2x1x96xf32>
    %76 = vector.shape_cast %75 : vector<2x1x96xf32> to vector<2x96xf32>
    %77 = arith.subf %74, %69 : vector<2x96xf32>
    %78 = arith.mulf %76, %77 : vector<2x96xf32>
    %79 = arith.addf %69, %78 : vector<2x96xf32>
    %80 = vector.extract_strided_slice %7 {offsets = [0, 6, 0], sizes = [2, 1, 96], strides = [1, 1, 1]} : vector<2x8x96xf32> to vector<2x1x96xf32>
    %81 = vector.shape_cast %80 : vector<2x1x96xf32> to vector<2x96xf32>
    %cst_28 = arith.constant dense<0.000000e+00> : vector<2x96xf32>
    %82 = tpu.matmul %79, %17, %cst_28 {dimension_numbers = #tpu.dot_dimension_numbers<[1], [0], [0], [1], [0, 0, 1, 1], [], []>} : vector<2x96xf32>, vector<96x96xf32>, vector<2x96xf32> -> vector<2x96xf32>
    %83 = arith.addf %81, %82 : vector<2x96xf32>
    %84 = math.tanh %83 : vector<2x96xf32>
    %85 = vector.extract_strided_slice %16 {offsets = [0, 6, 0], sizes = [2, 1, 96], strides = [1, 1, 1]} : vector<2x8x96xf32> to vector<2x1x96xf32>
    %86 = vector.shape_cast %85 : vector<2x1x96xf32> to vector<2x96xf32>
    %87 = arith.subf %84, %79 : vector<2x96xf32>
    %88 = arith.mulf %86, %87 : vector<2x96xf32>
    %89 = arith.addf %79, %88 : vector<2x96xf32>
    %90 = vector.extract_strided_slice %7 {offsets = [0, 7, 0], sizes = [2, 1, 96], strides = [1, 1, 1]} : vector<2x8x96xf32> to vector<2x1x96xf32>
    %91 = vector.shape_cast %90 : vector<2x1x96xf32> to vector<2x96xf32>
    %cst_29 = arith.constant dense<0.000000e+00> : vector<2x96xf32>
    %92 = tpu.matmul %89, %17, %cst_29 {dimension_numbers = #tpu.dot_dimension_numbers<[1], [0], [0], [1], [0, 0, 1, 1], [], []>} : vector<2x96xf32>, vector<96x96xf32>, vector<2x96xf32> -> vector<2x96xf32>
    %93 = arith.addf %91, %92 : vector<2x96xf32>
    %94 = math.tanh %93 : vector<2x96xf32>
    %95 = vector.extract_strided_slice %16 {offsets = [0, 7, 0], sizes = [2, 1, 96], strides = [1, 1, 1]} : vector<2x8x96xf32> to vector<2x1x96xf32>
    %96 = vector.shape_cast %95 : vector<2x1x96xf32> to vector<2x96xf32>
    %97 = arith.subf %94, %89 : vector<2x96xf32>
    %98 = arith.mulf %96, %97 : vector<2x96xf32>
    %99 = arith.addf %89, %98 : vector<2x96xf32>
    %100 = vector.extract_strided_slice %15 {offsets = [0, 0, 0], sizes = [2, 1, 96], strides = [1, 1, 1]} : vector<2x8x96xf32> to vector<2x1x96xf32>
    %101 = vector.shape_cast %100 : vector<2x1x96xf32> to vector<2x96xf32>
    %cst_30 = arith.constant dense<0.000000e+00> : vector<2x96xf32>
    %102 = tpu.matmul %99, %18, %cst_30 {dimension_numbers = #tpu.dot_dimension_numbers<[1], [0], [0], [1], [0, 0, 1, 1], [], []>} : vector<2x96xf32>, vector<96x96xf32>, vector<2x96xf32> -> vector<2x96xf32>
    %103 = arith.addf %101, %102 : vector<2x96xf32>
    %104 = math.tanh %103 : vector<2x96xf32>
    %c0_31 = arith.constant 0 : index
    %c0_32 = arith.constant 0 : index
    %c0_33 = arith.constant 0 : index
    %105 = vector.load %arg14[%c0_31, %c0_32, %c0_33] : memref<2x8x96xf32, #tpu.memory_space<vmem>>, vector<2x1x96xf32>
    %106 = vector.shape_cast %105 : vector<2x1x96xf32> to vector<2x96xf32>
    %107 = vector.shape_cast %104 : vector<2x96xf32> to vector<2x1x96xf32>
    tpu.vector_store %arg14[%c0_31, %c0_32, %c0_33], %107 {strides = array<i32>} : memref<2x8x96xf32, #tpu.memory_space<vmem>>, vector<2x1x96xf32>,
    %108 = vector.extract_strided_slice %15 {offsets = [0, 1, 0], sizes = [2, 1, 96], strides = [1, 1, 1]} : vector<2x8x96xf32> to vector<2x1x96xf32>
    %109 = vector.shape_cast %108 : vector<2x1x96xf32> to vector<2x96xf32>
    %cst_34 = arith.constant dense<0.000000e+00> : vector<2x96xf32>
    %110 = tpu.matmul %104, %18, %cst_34 {dimension_numbers = #tpu.dot_dimension_numbers<[1], [0], [0], [1], [0, 0, 1, 1], [], []>} : vector<2x96xf32>, vector<96x96xf32>, vector<2x96xf32> -> vector<2x96xf32>
    %111 = arith.addf %109, %110 : vector<2x96xf32>
    %112 = math.tanh %111 : vector<2x96xf32>
    %c0_35 = arith.constant 0 : index
    %c1 = arith.constant 1 : index
    %c0_36 = arith.constant 0 : index
    %113 = vector.load %arg14[%c0_35, %c1, %c0_36] : memref<2x8x96xf32, #tpu.memory_space<vmem>>, vector<2x1x96xf32>
    %114 = vector.shape_cast %113 : vector<2x1x96xf32> to vector<2x96xf32>
    %115 = vector.shape_cast %112 : vector<2x96xf32> to vector<2x1x96xf32>
    tpu.vector_store %arg14[%c0_35, %c1, %c0_36], %115 {strides = array<i32>} : memref<2x8x96xf32, #tpu.memory_space<vmem>>, vector<2x1x96xf32>,
    %116 = vector.extract_strided_slice %15 {offsets = [0, 2, 0], sizes = [2, 1, 96], strides = [1, 1, 1]} : vector<2x8x96xf32> to vector<2x1x96xf32>
    %117 = vector.shape_cast %116 : vector<2x1x96xf32> to vector<2x96xf32>
    %cst_37 = arith.constant dense<0.000000e+00> : vector<2x96xf32>
    %118 = tpu.matmul %112, %18, %cst_37 {dimension_numbers = #tpu.dot_dimension_numbers<[1], [0], [0], [1], [0, 0, 1, 1], [], []>} : vector<2x96xf32>, vector<96x96xf32>, vector<2x96xf32> -> vector<2x96xf32>
    %119 = arith.addf %117, %118 : vector<2x96xf32>
    %120 = math.tanh %119 : vector<2x96xf32>
    %c0_38 = arith.constant 0 : index
    %c2 = arith.constant 2 : index
    %c0_39 = arith.constant 0 : index
    %121 = vector.load %arg14[%c0_38, %c2, %c0_39] : memref<2x8x96xf32, #tpu.memory_space<vmem>>, vector<2x1x96xf32>
    %122 = vector.shape_cast %121 : vector<2x1x96xf32> to vector<2x96xf32>
    %123 = vector.shape_cast %120 : vector<2x96xf32> to vector<2x1x96xf32>
    tpu.vector_store %arg14[%c0_38, %c2, %c0_39], %123 {strides = array<i32>} : memref<2x8x96xf32, #tpu.memory_space<vmem>>, vector<2x1x96xf32>,
    %124 = vector.extract_strided_slice %15 {offsets = [0, 3, 0], sizes = [2, 1, 96], strides = [1, 1, 1]} : vector<2x8x96xf32> to vector<2x1x96xf32>
    %125 = vector.shape_cast %124 : vector<2x1x96xf32> to vector<2x96xf32>
    %cst_40 = arith.constant dense<0.000000e+00> : vector<2x96xf32>
    %126 = tpu.matmul %120, %18, %cst_40 {dimension_numbers = #tpu.dot_dimension_numbers<[1], [0], [0], [1], [0, 0, 1, 1], [], []>} : vector<2x96xf32>, vector<96x96xf32>, vector<2x96xf32> -> vector<2x96xf32>
    %127 = arith.addf %125, %126 : vector<2x96xf32>
    %128 = math.tanh %127 : vector<2x96xf32>
    %c0_41 = arith.constant 0 : index
    %c3 = arith.constant 3 : index
    %c0_42 = arith.constant 0 : index
    %129 = vector.load %arg14[%c0_41, %c3, %c0_42] : memref<2x8x96xf32, #tpu.memory_space<vmem>>, vector<2x1x96xf32>
    %130 = vector.shape_cast %129 : vector<2x1x96xf32> to vector<2x96xf32>
    %131 = vector.shape_cast %128 : vector<2x96xf32> to vector<2x1x96xf32>
    tpu.vector_store %arg14[%c0_41, %c3, %c0_42], %131 {strides = array<i32>} : memref<2x8x96xf32, #tpu.memory_space<vmem>>, vector<2x1x96xf32>,
    %132 = vector.extract_strided_slice %15 {offsets = [0, 4, 0], sizes = [2, 1, 96], strides = [1, 1, 1]} : vector<2x8x96xf32> to vector<2x1x96xf32>
    %133 = vector.shape_cast %132 : vector<2x1x96xf32> to vector<2x96xf32>
    %cst_43 = arith.constant dense<0.000000e+00> : vector<2x96xf32>
    %134 = tpu.matmul %128, %18, %cst_43 {dimension_numbers = #tpu.dot_dimension_numbers<[1], [0], [0], [1], [0, 0, 1, 1], [], []>} : vector<2x96xf32>, vector<96x96xf32>, vector<2x96xf32> -> vector<2x96xf32>
    %135 = arith.addf %133, %134 : vector<2x96xf32>
    %136 = math.tanh %135 : vector<2x96xf32>
    %c0_44 = arith.constant 0 : index
    %c4 = arith.constant 4 : index
    %c0_45 = arith.constant 0 : index
    %137 = vector.load %arg14[%c0_44, %c4, %c0_45] : memref<2x8x96xf32, #tpu.memory_space<vmem>>, vector<2x1x96xf32>
    %138 = vector.shape_cast %137 : vector<2x1x96xf32> to vector<2x96xf32>
    %139 = vector.shape_cast %136 : vector<2x96xf32> to vector<2x1x96xf32>
    tpu.vector_store %arg14[%c0_44, %c4, %c0_45], %139 {strides = array<i32>} : memref<2x8x96xf32, #tpu.memory_space<vmem>>, vector<2x1x96xf32>,
    %140 = vector.extract_strided_slice %15 {offsets = [0, 5, 0], sizes = [2, 1, 96], strides = [1, 1, 1]} : vector<2x8x96xf32> to vector<2x1x96xf32>
    %141 = vector.shape_cast %140 : vector<2x1x96xf32> to vector<2x96xf32>
    %cst_46 = arith.constant dense<0.000000e+00> : vector<2x96xf32>
    %142 = tpu.matmul %136, %18, %cst_46 {dimension_numbers = #tpu.dot_dimension_numbers<[1], [0], [0], [1], [0, 0, 1, 1], [], []>} : vector<2x96xf32>, vector<96x96xf32>, vector<2x96xf32> -> vector<2x96xf32>
    %143 = arith.addf %141, %142 : vector<2x96xf32>
    %144 = math.tanh %143 : vector<2x96xf32>
    %c0_47 = arith.constant 0 : index
    %c5 = arith.constant 5 : index
    %c0_48 = arith.constant 0 : index
    %145 = vector.load %arg14[%c0_47, %c5, %c0_48] : memref<2x8x96xf32, #tpu.memory_space<vmem>>, vector<2x1x96xf32>
    %146 = vector.shape_cast %145 : vector<2x1x96xf32> to vector<2x96xf32>
    %147 = vector.shape_cast %144 : vector<2x96xf32> to vector<2x1x96xf32>
    tpu.vector_store %arg14[%c0_47, %c5, %c0_48], %147 {strides = array<i32>} : memref<2x8x96xf32, #tpu.memory_space<vmem>>, vector<2x1x96xf32>,
    %148 = vector.extract_strided_slice %15 {offsets = [0, 6, 0], sizes = [2, 1, 96], strides = [1, 1, 1]} : vector<2x8x96xf32> to vector<2x1x96xf32>
    %149 = vector.shape_cast %148 : vector<2x1x96xf32> to vector<2x96xf32>
    %cst_49 = arith.constant dense<0.000000e+00> : vector<2x96xf32>
    %150 = tpu.matmul %144, %18, %cst_49 {dimension_numbers = #tpu.dot_dimension_numbers<[1], [0], [0], [1], [0, 0, 1, 1], [], []>} : vector<2x96xf32>, vector<96x96xf32>, vector<2x96xf32> -> vector<2x96xf32>
    %151 = arith.addf %149, %150 : vector<2x96xf32>
    %152 = math.tanh %151 : vector<2x96xf32>
    %c0_50 = arith.constant 0 : index
    %c6 = arith.constant 6 : index
    %c0_51 = arith.constant 0 : index
    %153 = vector.load %arg14[%c0_50, %c6, %c0_51] : memref<2x8x96xf32, #tpu.memory_space<vmem>>, vector<2x1x96xf32>
    %154 = vector.shape_cast %153 : vector<2x1x96xf32> to vector<2x96xf32>
    %155 = vector.shape_cast %152 : vector<2x96xf32> to vector<2x1x96xf32>
    tpu.vector_store %arg14[%c0_50, %c6, %c0_51], %155 {strides = array<i32>} : memref<2x8x96xf32, #tpu.memory_space<vmem>>, vector<2x1x96xf32>,
    %156 = vector.extract_strided_slice %15 {offsets = [0, 7, 0], sizes = [2, 1, 96], strides = [1, 1, 1]} : vector<2x8x96xf32> to vector<2x1x96xf32>
    %157 = vector.shape_cast %156 : vector<2x1x96xf32> to vector<2x96xf32>
    %cst_52 = arith.constant dense<0.000000e+00> : vector<2x96xf32>
    %158 = tpu.matmul %152, %18, %cst_52 {dimension_numbers = #tpu.dot_dimension_numbers<[1], [0], [0], [1], [0, 0, 1, 1], [], []>} : vector<2x96xf32>, vector<96x96xf32>, vector<2x96xf32> -> vector<2x96xf32>
    %159 = arith.addf %157, %158 : vector<2x96xf32>
    %160 = math.tanh %159 : vector<2x96xf32>
    %c0_53 = arith.constant 0 : index
    %c7 = arith.constant 7 : index
    %c0_54 = arith.constant 0 : index
    %161 = vector.load %arg14[%c0_53, %c7, %c0_54] : memref<2x8x96xf32, #tpu.memory_space<vmem>>, vector<2x1x96xf32>
    %162 = vector.shape_cast %161 : vector<2x1x96xf32> to vector<2x96xf32>
    %163 = vector.shape_cast %160 : vector<2x96xf32> to vector<2x1x96xf32>
    tpu.vector_store %arg14[%c0_53, %c7, %c0_54], %163 {strides = array<i32>} : memref<2x8x96xf32, #tpu.memory_space<vmem>>, vector<2x1x96xf32>,
    %c0_55 = arith.constant 0 : index
    %c0_56 = arith.constant 0 : index
    %c0_57 = arith.constant 0 : index
    %164 = vector.load %arg14[%c0_55, %c0_56, %c0_57] : memref<2x8x96xf32, #tpu.memory_space<vmem>>, vector<2x8x96xf32>
    %165 = vector.shape_cast %164 : vector<2x8x96xf32> to vector<16x96xf32>
    %c0_58 = arith.constant 0 : index
    %c0_59 = arith.constant 0 : index
    %166 = vector.load %arg10[%c0_58, %c0_59] : memref<96x384xf32, #tpu.memory_space<vmem>>, vector<96x384xf32>
    %cst_60 = arith.constant dense<0.000000e+00> : vector<16x384xf32>
    %167 = tpu.matmul %165, %166, %cst_60 {dimension_numbers = #tpu.dot_dimension_numbers<[1], [0], [0], [1], [0, 0, 1, 1], [], []>} : vector<16x96xf32>, vector<96x384xf32>, vector<16x384xf32> -> vector<16x384xf32>
    %c0_61 = arith.constant 0 : index
    %c0_62 = arith.constant 0 : index
    %168 = vector.load %arg11[%c0_61, %c0_62] : memref<1x384xf32, #tpu.memory_space<vmem>>, vector<1x384xf32>
    %169 = vector.broadcast %168 : vector<1x384xf32> to vector<16x384xf32>
    %170 = arith.addf %167, %169 : vector<16x384xf32>
    %171 = tpu.iota {dimensions = array<i32: 1>} : vector<16x128xi32>
    %cst_63 = arith.constant 1.000000e+00 : f32
    %172 = vector.broadcast %cst_63 : f32 to vector<1x1xf32>
    %173 = vector.extract_strided_slice %170 {offsets = [0, 0], sizes = [16, 128], strides = [1, 1]} : vector<16x384xf32> to vector<16x128xf32>
    %cst_64 = arith.constant dense<0xFF800000> : vector<16xf32>
    %174 = vector.multi_reduction <maximumf>, %173, %cst_64 [1] : vector<16x128xf32> to vector<16xf32>
    %175 = vector.shape_cast %174 : vector<16xf32> to vector<16x1xf32>
    %176 = vector.broadcast %175 : vector<16x1xf32> to vector<16x128xf32>
    %177 = arith.subf %173, %176 : vector<16x128xf32>
    %178 = math.exp %177 : vector<16x128xf32>
    %cst_65 = arith.constant dense<0.000000e+00> : vector<16xf32>
    %179 = vector.multi_reduction <add>, %178, %cst_65 [1] : vector<16x128xf32> to vector<16xf32>
    %180 = vector.shape_cast %179 : vector<16xf32> to vector<16x1xf32>
    %181 = math.log %180 : vector<16x1xf32>
    %182 = arith.addf %175, %181 : vector<16x1xf32>
    %183 = vector.broadcast %182 : vector<16x1xf32> to vector<16x128xf32>
    %184 = arith.subf %173, %183 : vector<16x128xf32>
    %c0_66 = arith.constant 0 : index
    %c0_67 = arith.constant 0 : index
    %c0_68 = arith.constant 0 : index
    %185 = vector.load %arg12[%c0_66, %c0_67, %c0_68] : memref<3x16x128xf32, #tpu.memory_space<vmem>>, vector<1x16x128xf32>
    %186 = vector.shape_cast %185 : vector<1x16x128xf32> to vector<16x128xf32>
    %187 = vector.shape_cast %184 : vector<16x128xf32> to vector<1x16x128xf32>
    tpu.vector_store %arg12[%c0_66, %c0_67, %c0_68], %187 {strides = array<i32>} : memref<3x16x128xf32, #tpu.memory_space<vmem>>, vector<1x16x128xf32>,
    %cst_69 = arith.constant -1.000000e+02 : f32
    %cst_70 = arith.constant -1.000000e-10 : f32
    %188 = vector.broadcast %cst_69 : f32 to vector<16x128xf32>
    %189 = arith.maximumf %188, %184 : vector<16x128xf32>
    %190 = vector.broadcast %cst_70 : f32 to vector<16x128xf32>
    %191 = arith.minimumf %190, %189 : vector<16x128xf32>
    %c0_71 = arith.constant 0 : index
    %c0_72 = arith.constant 0 : index
    %c0_73 = arith.constant 0 : index
    %192 = vector.load %arg3[%c0_71, %c0_72, %c0_73] : memref<3x16x1xi32, #tpu.memory_space<vmem>>, vector<1x16x1xi32>
    %193 = vector.shape_cast %192 : vector<1x16x1xi32> to vector<16x1xi32>
    %194 = vector.broadcast %193 : vector<16x1xi32> to vector<16x128xi32>
    %195 = arith.cmpi eq, %171, %194 : vector<16x128xi32>
    %cst_74 = arith.constant 0.000000e+00 : f32
    %196 = vector.broadcast %cst_74 : f32 to vector<16x128xf32>
    %197 = arith.select %195, %191, %196 : vector<16x128xi1>, vector<16x128xf32>
    %198 = vector.shape_cast %197 : vector<16x128xf32> to vector<1x16x128xf32>
    %cst_75 = arith.constant dense<0.000000e+00> : vector<1xf32>
    %199 = vector.multi_reduction <add>, %198, %cst_75 [1, 2] : vector<1x16x128xf32> to vector<1xf32>
    %200 = vector.shape_cast %199 : vector<1xf32> to vector<1x1x1xf32>
    %201 = vector.extract %200[0, 0, 0] : f32 from vector<1x1x1xf32>
    %cst_76 = arith.constant 0.000000e+00 : f32
    %202 = arith.subf %cst_76, %201 : f32
    %cst_77 = arith.constant 0.0714285746 : f32
    %203 = arith.mulf %202, %cst_77 : f32
    %204 = vector.broadcast %203 : f32 to vector<1x1xf32>
    %205 = arith.mulf %204, %172 : vector<1x1xf32>
    %c0_78 = arith.constant 0 : index
    %c0_79 = arith.constant 0 : index
    %c0_80 = arith.constant 0 : index
    %206 = vector.load %arg13[%c0_78, %c0_79, %c0_80] : memref<3x1x1xf32, #tpu.memory_space<vmem>>, vector<1x1x1xf32>
    %207 = vector.shape_cast %206 : vector<1x1x1xf32> to vector<1x1xf32>
    %208 = vector.shape_cast %205 : vector<1x1xf32> to vector<1x1x1xf32>
    tpu.vector_store %arg13[%c0_78, %c0_79, %c0_80], %208 {strides = array<i32>} : memref<3x1x1xf32, #tpu.memory_space<vmem>>, vector<1x1x1xf32>,
    %209 = vector.extract_strided_slice %170 {offsets = [0, 128], sizes = [16, 128], strides = [1, 1]} : vector<16x384xf32> to vector<16x128xf32>
    %cst_81 = arith.constant dense<0xFF800000> : vector<16xf32>
    %210 = vector.multi_reduction <maximumf>, %209, %cst_81 [1] : vector<16x128xf32> to vector<16xf32>
    %211 = vector.shape_cast %210 : vector<16xf32> to vector<16x1xf32>
    %212 = vector.broadcast %211 : vector<16x1xf32> to vector<16x128xf32>
    %213 = arith.subf %209, %212 : vector<16x128xf32>
    %214 = math.exp %213 : vector<16x128xf32>
    %cst_82 = arith.constant dense<0.000000e+00> : vector<16xf32>
    %215 = vector.multi_reduction <add>, %214, %cst_82 [1] : vector<16x128xf32> to vector<16xf32>
    %216 = vector.shape_cast %215 : vector<16xf32> to vector<16x1xf32>
    %217 = math.log %216 : vector<16x1xf32>
    %218 = arith.addf %211, %217 : vector<16x1xf32>
    %219 = vector.broadcast %218 : vector<16x1xf32> to vector<16x128xf32>
    %220 = arith.subf %209, %219 : vector<16x128xf32>
    %c1_83 = arith.constant 1 : index
    %c0_84 = arith.constant 0 : index
    %c0_85 = arith.constant 0 : index
    %221 = vector.load %arg12[%c1_83, %c0_84, %c0_85] : memref<3x16x128xf32, #tpu.memory_space<vmem>>, vector<1x16x128xf32>
    %222 = vector.shape_cast %221 : vector<1x16x128xf32> to vector<16x128xf32>
    %223 = vector.shape_cast %220 : vector<16x128xf32> to vector<1x16x128xf32>
    tpu.vector_store %arg12[%c1_83, %c0_84, %c0_85], %223 {strides = array<i32>} : memref<3x16x128xf32, #tpu.memory_space<vmem>>, vector<1x16x128xf32>,
    %cst_86 = arith.constant -1.000000e+02 : f32
    %cst_87 = arith.constant -1.000000e-10 : f32
    %224 = vector.broadcast %cst_86 : f32 to vector<16x128xf32>
    %225 = arith.maximumf %224, %220 : vector<16x128xf32>
    %226 = vector.broadcast %cst_87 : f32 to vector<16x128xf32>
    %227 = arith.minimumf %226, %225 : vector<16x128xf32>
    %c1_88 = arith.constant 1 : index
    %c0_89 = arith.constant 0 : index
    %c0_90 = arith.constant 0 : index
    %228 = vector.load %arg3[%c1_88, %c0_89, %c0_90] : memref<3x16x1xi32, #tpu.memory_space<vmem>>, vector<1x16x1xi32>
    %229 = vector.shape_cast %228 : vector<1x16x1xi32> to vector<16x1xi32>
    %230 = vector.broadcast %229 : vector<16x1xi32> to vector<16x128xi32>
    %231 = arith.cmpi eq, %171, %230 : vector<16x128xi32>
    %cst_91 = arith.constant 0.000000e+00 : f32
    %232 = vector.broadcast %cst_91 : f32 to vector<16x128xf32>
    %233 = arith.select %231, %227, %232 : vector<16x128xi1>, vector<16x128xf32>
    %234 = vector.shape_cast %233 : vector<16x128xf32> to vector<1x16x128xf32>
    %cst_92 = arith.constant dense<0.000000e+00> : vector<1xf32>
    %235 = vector.multi_reduction <add>, %234, %cst_92 [1, 2] : vector<1x16x128xf32> to vector<1xf32>
    %236 = vector.shape_cast %235 : vector<1xf32> to vector<1x1x1xf32>
    %237 = vector.extract %236[0, 0, 0] : f32 from vector<1x1x1xf32>
    %cst_93 = arith.constant 0.000000e+00 : f32
    %238 = arith.subf %cst_93, %237 : f32
    %cst_94 = arith.constant 0.0714285746 : f32
    %239 = arith.mulf %238, %cst_94 : f32
    %240 = vector.broadcast %239 : f32 to vector<1x1xf32>
    %241 = arith.mulf %240, %172 : vector<1x1xf32>
    %c1_95 = arith.constant 1 : index
    %c0_96 = arith.constant 0 : index
    %c0_97 = arith.constant 0 : index
    %242 = vector.load %arg13[%c1_95, %c0_96, %c0_97] : memref<3x1x1xf32, #tpu.memory_space<vmem>>, vector<1x1x1xf32>
    %243 = vector.shape_cast %242 : vector<1x1x1xf32> to vector<1x1xf32>
    %244 = vector.shape_cast %241 : vector<1x1xf32> to vector<1x1x1xf32>
    tpu.vector_store %arg13[%c1_95, %c0_96, %c0_97], %244 {strides = array<i32>} : memref<3x1x1xf32, #tpu.memory_space<vmem>>, vector<1x1x1xf32>,
    %245 = vector.extract_strided_slice %170 {offsets = [0, 256], sizes = [16, 128], strides = [1, 1]} : vector<16x384xf32> to vector<16x128xf32>
    %cst_98 = arith.constant dense<0xFF800000> : vector<16xf32>
    %246 = vector.multi_reduction <maximumf>, %245, %cst_98 [1] : vector<16x128xf32> to vector<16xf32>
    %247 = vector.shape_cast %246 : vector<16xf32> to vector<16x1xf32>
    %248 = vector.broadcast %247 : vector<16x1xf32> to vector<16x128xf32>
    %249 = arith.subf %245, %248 : vector<16x128xf32>
    %250 = math.exp %249 : vector<16x128xf32>
    %cst_99 = arith.constant dense<0.000000e+00> : vector<16xf32>
    %251 = vector.multi_reduction <add>, %250, %cst_99 [1] : vector<16x128xf32> to vector<16xf32>
    %252 = vector.shape_cast %251 : vector<16xf32> to vector<16x1xf32>
    %253 = math.log %252 : vector<16x1xf32>
    %254 = arith.addf %247, %253 : vector<16x1xf32>
    %255 = vector.broadcast %254 : vector<16x1xf32> to vector<16x128xf32>
    %256 = arith.subf %245, %255 : vector<16x128xf32>
    %c2_100 = arith.constant 2 : index
    %c0_101 = arith.constant 0 : index
    %c0_102 = arith.constant 0 : index
    %257 = vector.load %arg12[%c2_100, %c0_101, %c0_102] : memref<3x16x128xf32, #tpu.memory_space<vmem>>, vector<1x16x128xf32>
    %258 = vector.shape_cast %257 : vector<1x16x128xf32> to vector<16x128xf32>
    %259 = vector.shape_cast %256 : vector<16x128xf32> to vector<1x16x128xf32>
    tpu.vector_store %arg12[%c2_100, %c0_101, %c0_102], %259 {strides = array<i32>} : memref<3x16x128xf32, #tpu.memory_space<vmem>>, vector<1x16x128xf32>,
    %cst_103 = arith.constant -1.000000e+02 : f32
    %cst_104 = arith.constant -1.000000e-10 : f32
    %260 = vector.broadcast %cst_103 : f32 to vector<16x128xf32>
    %261 = arith.maximumf %260, %256 : vector<16x128xf32>
    %262 = vector.broadcast %cst_104 : f32 to vector<16x128xf32>
    %263 = arith.minimumf %262, %261 : vector<16x128xf32>
    %c2_105 = arith.constant 2 : index
    %c0_106 = arith.constant 0 : index
    %c0_107 = arith.constant 0 : index
    %264 = vector.load %arg3[%c2_105, %c0_106, %c0_107] : memref<3x16x1xi32, #tpu.memory_space<vmem>>, vector<1x16x1xi32>
    %265 = vector.shape_cast %264 : vector<1x16x1xi32> to vector<16x1xi32>
    %266 = vector.broadcast %265 : vector<16x1xi32> to vector<16x128xi32>
    %267 = arith.cmpi eq, %171, %266 : vector<16x128xi32>
    %cst_108 = arith.constant 0.000000e+00 : f32
    %268 = vector.broadcast %cst_108 : f32 to vector<16x128xf32>
    %269 = arith.select %267, %263, %268 : vector<16x128xi1>, vector<16x128xf32>
    %270 = vector.shape_cast %269 : vector<16x128xf32> to vector<1x16x128xf32>
    %cst_109 = arith.constant dense<0.000000e+00> : vector<1xf32>
    %271 = vector.multi_reduction <add>, %270, %cst_109 [1, 2] : vector<1x16x128xf32> to vector<1xf32>
    %272 = vector.shape_cast %271 : vector<1xf32> to vector<1x1x1xf32>
    %273 = vector.extract %272[0, 0, 0] : f32 from vector<1x1x1xf32>
    %cst_110 = arith.constant 0.000000e+00 : f32
    %274 = arith.subf %cst_110, %273 : f32
    %cst_111 = arith.constant 0.0714285746 : f32
    %275 = arith.mulf %274, %cst_111 : f32
    %276 = vector.broadcast %275 : f32 to vector<1x1xf32>
    %277 = arith.mulf %276, %172 : vector<1x1xf32>
    %c2_112 = arith.constant 2 : index
    %c0_113 = arith.constant 0 : index
    %c0_114 = arith.constant 0 : index
    %278 = vector.load %arg13[%c2_112, %c0_113, %c0_114] : memref<3x1x1xf32, #tpu.memory_space<vmem>>, vector<1x1x1xf32>
    %279 = vector.shape_cast %278 : vector<1x1x1xf32> to vector<1x1xf32>
    %280 = vector.shape_cast %277 : vector<1x1xf32> to vector<1x1x1xf32>
    tpu.vector_store %arg13[%c2_112, %c0_113, %c0_114], %280 {strides = array<i32>} : memref<3x1x1xf32, #tpu.memory_space<vmem>>, vector<1x1x1xf32>,
    return
  }
}

</mosaic_0001>

<llo_original>
// kernel: tpu_custom_call.1
$region0: #{tpu_custom_call.1}
  #allocation0 [shape = 'u32[]', space=smem, size = 0x4, offset = 0x4, fixed_abs, tag = 'smem constant byte address 0x4 - core index']
  #allocation1 [shape = 'u32[144,128]{1,0:T(1,128)}', space=vmem, size = 0x12000, scoped, tag = 'internal scratch']
  #allocation2 [shape = 'f32[2,8,96]{2,1,0:T(8,128)}', space=vmem, size = 0x2000, scoped, tag = 'scratch operand']
  %s0 = inlined_call_operand.vmem [shape: f32[2,8,96], index: 0, kind: input, shape index: {}]
  %s1 = inlined_call_operand.vmem [shape: f32[2,8,96], index: 1, kind: input, shape index: {}]
  %s2 = inlined_call_operand.vmem [shape: f32[2,8,96], index: 2, kind: input, shape index: {}]
  %s3 = inlined_call_operand.vmem [shape: s32[3,16,1], index: 3, kind: input, shape index: {}]
  %s4 = inlined_call_operand.hbm [shape: f32[96,96], index: 4, kind: input, shape index: {}]
  %s5 = inlined_call_operand.vmem [shape: f32[1,96], index: 5, kind: input, shape index: {}]
  %s6 = inlined_call_operand.hbm [shape: f32[96,96], index: 6, kind: input, shape index: {}]
  %s7 = inlined_call_operand.hbm [shape: f32[96,96], index: 7, kind: input, shape index: {}]
  %s8 = inlined_call_operand.vmem [shape: f32[1,96], index: 8, kind: input, shape index: {}]
  %s9 = inlined_call_operand.hbm [shape: f32[96,96], index: 9, kind: input, shape index: {}]
  %s10 = inlined_call_operand.hbm [shape: f32[96,384], index: 10, kind: input, shape index: {}]
  %s11 = inlined_call_operand.vmem [shape: f32[1,384], index: 11, kind: input, shape index: {}]
  %s12 = inlined_call_operand.hbm [shape: f32[3,16,128], index: 12, kind: output, shape index: {0}]
  %s13 = inlined_call_operand.vmem [shape: f32[3,1,1], index: 13, kind: output, shape index: {1}]
  %14 = xla_tuple %s12, %s13
  %s15 = sld [smem:[#allocation0]]
  $region86: #{tpu_custom_call.1} parent=0
    _
  %s17 = ssub.s32 1, %s15
  %s18 = scalar_select 0, %s17, %s15
  $region1: #{tpu_custom_call.1} parent=0
    #allocation3 [shape = 'u8[49152]{0}', space=vmem, size = 0xc000, scoped, tag = 'input window, operand 4, single buffered']
    #allocation4 [shape = 's32[1]{0}', space=sflag, size = 0x4, scoped, tag = 'scoped memory for tpu_custom_call.1']
    #allocation5 [shape = 's32[1]{0}', space=sflag, size = 0x4, scoped, tag = 'scoped memory for tpu_custom_call.1']
    #allocation6 [shape = 'u8[49152]{0}', space=vmem, size = 0xc000, scoped, tag = 'input window, operand 6, single buffered']
    #allocation7 [shape = 's32[1]{0}', space=sflag, size = 0x4, scoped, tag = 'scoped memory for tpu_custom_call.1']
    #allocation8 [shape = 'u8[49152]{0}', space=vmem, size = 0xc000, scoped, tag = 'input window, operand 7, single buffered']
    #allocation9 [shape = 'u8[49152]{0}', space=vmem, size = 0xc000, scoped, tag = 'input window, operand 9, single buffered']
    #allocation10 [shape = 's32[1]{0}', space=sflag, size = 0x4, scoped, tag = 'scoped memory for tpu_custom_call.1']
    #allocation11 [shape = 'u8[147456]{0}', space=vmem, size = 0x24000, scoped, tag = 'input window, operand 10, single buffered']
    #allocation12 [shape = 'u8[24576]{0}', space=vmem, size = 0x6000, scoped, tag = 'output window, operand 0, single buffered']
    %19 = vsyncpa [#allocation4], 0
    %20 = vsyncpa [#allocation7], 0
    %21 = vsyncpa [#allocation10], 0
    %22 = vsyncpa [#allocation5], 0
    // Predicated region
    $region2: #{tpu_custom_call.1} parent=1 // pred_check
      _
    $region3: #{tpu_custom_call.1} parent=1 // pred_check_branch
      %24 = sbr.rel (0) target = $region5
    $region4: #{tpu_custom_call.1} parent=1 // pred_region
      _
    $region5: #{tpu_custom_call.1} parent=1 // pred_fallthru
      _
    // Predicated region
    $region6: #{tpu_custom_call.1} parent=1 // pred_check
      _
    $region7: #{tpu_custom_call.1} parent=1 // pred_check_branch
      %26 = sbr.rel (0) target = $region9
    $region8: #{tpu_custom_call.1} parent=1 // pred_region
      _
    $region9: #{tpu_custom_call.1} parent=1 // pred_fallthru
      _
    // Predicated region
    $region10: #{tpu_custom_call.1} parent=1 // pred_check
      _
    $region11: #{tpu_custom_call.1} parent=1 // pred_check_branch
      %28 = sbr.rel (0) target = $region13
    $region12: #{tpu_custom_call.1} parent=1 // pred_region
      _
    $region13: #{tpu_custom_call.1} parent=1 // pred_fallthru
      _
    // Predicated region
    $region14: #{tpu_custom_call.1} parent=1 // pred_check
      _
    $region15: #{tpu_custom_call.1} parent=1 // pred_check_branch
      %30 = sbr.rel (0) target = $region17
    $region16: #{tpu_custom_call.1} parent=1 // pred_region
      _
    $region17: #{tpu_custom_call.1} parent=1 // pred_fallthru
      _
    // Predicated region
    $region18: #{tpu_custom_call.1} parent=1 // pred_check
      _
    $region19: #{tpu_custom_call.1} parent=1 // pred_check_branch
      %32 = sbr.rel (0) target = $region21
    $region20: #{tpu_custom_call.1} parent=1 // pred_region
      %s34 = ssub.s32 1536, 1536
      %35 = vsyncadd [#allocation4], %s34
      %s36 = sshll.u32 [#allocation3], 4
      %s37 = int_to_ptr.vmem [resolvable:$true] %s36
      %42 = dma.hbm_to_vmem [thread:$0]  %s4, 1536, %s37, [#allocation4], 128, 128, 8
    $region21: #{tpu_custom_call.1} parent=1 // pred_fallthru
      _
    // Predicated region
    $region22: #{tpu_custom_call.1} parent=1 // pred_check
      _
    $region23: #{tpu_custom_call.1} parent=1 // pred_check_branch
      %44 = sbr.rel (0) target = $region25
    $region24: #{tpu_custom_call.1} parent=1 // pred_region
      _
    $region25: #{tpu_custom_call.1} parent=1 // pred_fallthru
      _
    // Predicated region
    $region26: #{tpu_custom_call.1} parent=1 // pred_check
      _
    $region27: #{tpu_custom_call.1} parent=1 // pred_check_branch
      %46 = sbr.rel (0) target = $region29
    $region28: #{tpu_custom_call.1} parent=1 // pred_region
      %s48 = ssub.s32 1536, 1536
      %49 = vsyncadd [#allocation7], %s48
      %s50 = sshll.u32 [#allocation6], 4
      %s51 = int_to_ptr.vmem [resolvable:$true] %s50
      %56 = dma.hbm_to_vmem [thread:$0]  %s6, 1536, %s51, [#allocation7], 128, 128, 8
    $region29: #{tpu_custom_call.1} parent=1 // pred_fallthru
      _
    // Predicated region
    $region30: #{tpu_custom_call.1} parent=1 // pred_check
      _
    $region31: #{tpu_custom_call.1} parent=1 // pred_check_branch
      %58 = sbr.rel (0) target = $region33
    $region32: #{tpu_custom_call.1} parent=1 // pred_region
      %s60 = ssub.s32 1536, 1536
      %61 = vsyncadd [#allocation7], %s60
      %s62 = sshll.u32 [#allocation8], 4
      %s63 = int_to_ptr.vmem [resolvable:$true] %s62
      %68 = dma.hbm_to_vmem [thread:$0]  %s7, 1536, %s63, [#allocation7], 128, 128, 8
    $region33: #{tpu_custom_call.1} parent=1 // pred_fallthru
      _
    // Predicated region
    $region34: #{tpu_custom_call.1} parent=1 // pred_check
      _
    $region35: #{tpu_custom_call.1} parent=1 // pred_check_branch
      %70 = sbr.rel (0) target = $region37
    $region36: #{tpu_custom_call.1} parent=1 // pred_region
      _
    $region37: #{tpu_custom_call.1} parent=1 // pred_fallthru
      _
    // Predicated region
    $region38: #{tpu_custom_call.1} parent=1 // pred_check
      _
    $region39: #{tpu_custom_call.1} parent=1 // pred_check_branch
      %72 = sbr.rel (0) target = $region41
    $region40: #{tpu_custom_call.1} parent=1 // pred_region
      %s74 = ssub.s32 1536, 1536
      %75 = vsyncadd [#allocation10], %s74
      %s76 = sshll.u32 [#allocation9], 4
      %s77 = int_to_ptr.vmem [resolvable:$true] %s76
      %82 = dma.hbm_to_vmem [thread:$0]  %s9, 1536, %s77, [#allocation10], 128, 128, 8
    $region41: #{tpu_custom_call.1} parent=1 // pred_fallthru
      _
    // Predicated region
    $region42: #{tpu_custom_call.1} parent=1 // pred_check
      _
    $region43: #{tpu_custom_call.1} parent=1 // pred_check_branch
      %84 = sbr.rel (0) target = $region45
    $region44: #{tpu_custom_call.1} parent=1 // pred_region
      %s86 = ssub.s32 4608, 4608
      %87 = vsyncadd [#allocation10], %s86
      %s88 = sshll.u32 [#allocation11], 4
      %s89 = int_to_ptr.vmem [resolvable:$true] %s88
      %94 = dma.hbm_to_vmem [thread:$0]  %s10, 4608, %s89, [#allocation10], 384, 384, 24
    $region45: #{tpu_custom_call.1} parent=1 // pred_fallthru
      _
    // Predicated region
    $region46: #{tpu_custom_call.1} parent=1 // pred_check
      _
    $region47: #{tpu_custom_call.1} parent=1 // pred_check_branch
      %96 = sbr.rel (0) target = $region49
    $region48: #{tpu_custom_call.1} parent=1 // pred_region
      _
    $region49: #{tpu_custom_call.1} parent=1 // pred_fallthru
      _
    // Predicated region
    $region50: #{tpu_custom_call.1} parent=1 // pred_check
      _
    $region51: #{tpu_custom_call.1} parent=1 // pred_check_branch
      %98 = sbr.rel (0) target = $region53
    $region52: #{tpu_custom_call.1} parent=1 // pred_region
      %99 = dma.done [#allocation4], 1536
    $region53: #{tpu_custom_call.1} parent=1 // pred_fallthru
      _
    // Predicated region
    $region54: #{tpu_custom_call.1} parent=1 // pred_check
      _
    $region55: #{tpu_custom_call.1} parent=1 // pred_check_branch
      %101 = sbr.rel (0) target = $region57
    $region56: #{tpu_custom_call.1} parent=1 // pred_region
      %102 = dma.done [#allocation7], 1536
    $region57: #{tpu_custom_call.1} parent=1 // pred_fallthru
      _
    // Predicated region
    $region58: #{tpu_custom_call.1} parent=1 // pred_check
      _
    $region59: #{tpu_custom_call.1} parent=1 // pred_check_branch
      %104 = sbr.rel (0) target = $region61
    $region60: #{tpu_custom_call.1} parent=1 // pred_region
      %105 = dma.done [#allocation7], 1536
    $region61: #{tpu_custom_call.1} parent=1 // pred_fallthru
      _
    // Predicated region
    $region62: #{tpu_custom_call.1} parent=1 // pred_check
      _
    $region63: #{tpu_custom_call.1} parent=1 // pred_check_branch
      %107 = sbr.rel (0) target = $region65
    $region64: #{tpu_custom_call.1} parent=1 // pred_region
      %108 = dma.done [#allocation10], 1536
    $region65: #{tpu_custom_call.1} parent=1 // pred_fallthru
      _
    // Predicated region
    $region66: #{tpu_custom_call.1} parent=1 // pred_check
      _
    $region67: #{tpu_custom_call.1} parent=1 // pred_check_branch
      %110 = sbr.rel (0) target = $region69
    $region68: #{tpu_custom_call.1} parent=1 // pred_region
      %111 = dma.done [#allocation10], 4608
    $region69: #{tpu_custom_call.1} parent=1 // pred_fallthru
      _
    %v112 = vld [vmem:[%s0] sm:$0xff]
    %v113 = vld [vmem:[%s0 + $0x8] sm:$0xff]
    %v114 = vld [vmem:[#allocation3] sm:$0xff]
    %v115 = vld [vmem:[#allocation3 + $0x8] sm:$0xff]
    %v116 = vld [vmem:[#allocation3 + $0x10] sm:$0xff]
    %v117 = vld [vmem:[#allocation3 + $0x18] sm:$0xff]
    %v118 = vld [vmem:[#allocation3 + $0x20] sm:$0xff]
    %v119 = vld [vmem:[#allocation3 + $0x28] sm:$0xff]
    %v120 = vld [vmem:[#allocation3 + $0x30] sm:$0xff]
    %v121 = vld [vmem:[#allocation3 + $0x38] sm:$0xff]
    %v122 = vld [vmem:[#allocation3 + $0x40] sm:$0xff]
    %v123 = vld [vmem:[#allocation3 + $0x48] sm:$0xff]
    %v124 = vld [vmem:[#allocation3 + $0x50] sm:$0xff]
    %v125 = vld [vmem:[#allocation3 + $0x58] sm:$0xff]
    %v126 = vld [vmem:[%s5] sm:$0x1]
    %v128 = vlaneseq
    %v129 = vshrl.u32 %v128, 7
    %v130 = vsub.s32 0, %v129
    %v131 = vrot.slane %v126, %v130
    %vm133 = vcmask 785408
    %v135 = vsel %vm133, %v112, 0
    %v138 = vsel %vm133, %v113, 0
    %140 = vmatprep.subr.mxu0 0.0
    %141 = vmatpush1.msra.mxu0 0.0
    %142 = vmatprep.subr.mxu0 0.0
    %143 = vmatpush1.msra.mxu0 0.0
    %144 = vmatprep.subr.mxu0 0.0
    %145 = vmatpush1.msra.mxu0 0.0
    %146 = vmatprep.subr.mxu0 0.0
    %147 = vmatpush1.msra.mxu0 0.0
    %148 = vmatprep.subr.mxu0 0.0
    %149 = vmatpush1.msra.mxu0 %v125
    %150 = vmatprep.subr.mxu0 0.0
    %151 = vmatpush1.msra.mxu0 %v124
    %152 = vmatprep.subr.mxu0 0.0
    %153 = vmatpush1.msra.mxu0 %v123
    %154 = vmatprep.subr.mxu0 0.0
    %155 = vmatpush1.msra.mxu0 %v122
    %156 = vmatprep.subr.mxu0 0.0
    %157 = vmatpush1.msra.mxu0 %v121
    %158 = vmatprep.subr.mxu0 0.0
    %159 = vmatpush1.msra.mxu0 %v120
    %160 = vmatprep.subr.mxu0 0.0
    %161 = vmatpush1.msra.mxu0 %v119
    %162 = vmatprep.subr.mxu0 0.0
    %163 = vmatpush1.msra.mxu0 %v118
    %164 = vmatprep.subr.mxu0 0.0
    %165 = vmatpush1.msra.mxu0 %v117
    %166 = vmatprep.subr.mxu0 0.0
    %167 = vmatpush1.msra.mxu0 %v116
    %168 = vmatprep.subr.mxu0 0.0
    %169 = vmatpush1.msra.mxu0 %v115
    %170 = vmatprep.subr.mxu0 0.0
    %171 = vmatpush1.msra.mxu0 %v114
    %172 = vmatprep.subr.mxu0 0.0
    %173 = vmatpush2.msra.mxu0 0.0
    %174 = vmatprep.subr.mxu0 0.0
    %175 = vmatpush2.msra.mxu0 0.0
    %176 = vmatprep.subr.mxu0 0.0
    %177 = vmatpush2.msra.mxu0 0.0
    %178 = vmatprep.subr.mxu0 0.0
    %179 = vmatpush2.msra.mxu0 0.0
    %180 = vmatprep.subr.mxu0 0.0
    %181 = vmatpush2.msra.mxu0 0.0
    %182 = vmatprep.subr.mxu0 0.0
    %183 = vmatpush2.msra.mxu0 0.0
    %184 = vmatprep.subr.mxu0 0.0
    %185 = vmatpush2.msra.mxu0 0.0
    %186 = vmatprep.subr.mxu0 0.0
    %187 = vmatpush2.msra.mxu0 0.0
    %188 = vmatprep.subr.mxu0 0.0
    %189 = vmatpush2.msra.mxu0 0.0
    %190 = vmatprep.subr.mxu0 0.0
    %191 = vmatpush2.msra.mxu0 0.0
    %192 = vmatprep.subr.mxu0 0.0
    %193 = vmatpush2.msra.mxu0 0.0
    %194 = vmatprep.subr.mxu0 0.0
    %195 = vmatpush2.msra.mxu0 0.0
    %196 = vmatprep.subr.mxu0 0.0
    %197 = vmatpush2.msra.mxu0 0.0
    %198 = vmatprep.subr.mxu0 0.0
    %199 = vmatpush2.msra.mxu0 0.0
    %200 = vmatprep.subr.mxu0 0.0
    %201 = vmatpush2.msra.mxu0 0.0
    %202 = vmatprep.subr.mxu0 0.0
    %203 = vmatpush2.msra.mxu0 0.0
    %204 = vmatprep.mubr.f32.mxu0 0.0
    %205 = vmatmul.mubr.f32.gmra.mxu0 %v135
    %v206 = vpop.f32.mrf.mxu0
    %v207 = vadd.f32 %v131, %v206
    %v208 = vpop.f32.mrf.mxu0
    %209 = vmatprep.mubr.f32.mxu0 0.0
    %210 = vmatmul.mubr.f32.gmra.mxu0 %v138
    %v211 = vpop.f32.mrf.mxu0
    %v212 = vadd.f32 %v131, %v211
    %v213 = vpop.f32.mrf.mxu0
    %214 = vdwg.mxu0
    %v215 = vld [vmem:[%s2] sm:$0xff]
    %v216 = vld [vmem:[%s2 + $0x8] sm:$0xff]
    %v217 = vld [vmem:[#allocation8] sm:$0xff]
    %v218 = vld [vmem:[#allocation8 + $0x8] sm:$0xff]
    %v219 = vld [vmem:[#allocation8 + $0x10] sm:$0xff]
    %v220 = vld [vmem:[#allocation8 + $0x18] sm:$0xff]
    %v221 = vld [vmem:[#allocation8 + $0x20] sm:$0xff]
    %v222 = vld [vmem:[#allocation8 + $0x28] sm:$0xff]
    %v223 = vld [vmem:[#allocation8 + $0x30] sm:$0xff]
    %v224 = vld [vmem:[#allocation8 + $0x38] sm:$0xff]
    %v225 = vld [vmem:[#allocation8 + $0x40] sm:$0xff]
    %v226 = vld [vmem:[#allocation8 + $0x48] sm:$0xff]
    %v227 = vld [vmem:[#allocation8 + $0x50] sm:$0xff]
    %v228 = vld [vmem:[#allocation8 + $0x58] sm:$0xff]
    %v229 = vld [vmem:[%s8] sm:$0x1]
    %v231 = vlaneseq
    %v232 = vshrl.u32 %v231, 7
    %v233 = vsub.s32 0, %v232
    %v234 = vrot.slane %v229, %v233
    %v237 = vsel %vm133, %v215, 0
    %v240 = vsel %vm133, %v216, 0
    %242 = vmatprep.subr.mxu0 0.0
    %243 = vmatpush1.msra.mxu0 0.0
    %244 = vmatprep.subr.mxu0 0.0
    %245 = vmatpush1.msra.mxu0 0.0
    %246 = vmatprep.subr.mxu0 0.0
    %247 = vmatpush1.msra.mxu0 0.0
    %248 = vmatprep.subr.mxu0 0.0
    %249 = vmatpush1.msra.mxu0 0.0
    %250 = vmatprep.subr.mxu0 0.0
    %251 = vmatpush1.msra.mxu0 %v228
    %252 = vmatprep.subr.mxu0 0.0
    %253 = vmatpush1.msra.mxu0 %v227
    %254 = vmatprep.subr.mxu0 0.0
    %255 = vmatpush1.msra.mxu0 %v226
    %256 = vmatprep.subr.mxu0 0.0
    %257 = vmatpush1.msra.mxu0 %v225
    %258 = vmatprep.subr.mxu0 0.0
    %259 = vmatpush1.msra.mxu0 %v224
    %260 = vmatprep.subr.mxu0 0.0
    %261 = vmatpush1.msra.mxu0 %v223
    %262 = vmatprep.subr.mxu0 0.0
    %263 = vmatpush1.msra.mxu0 %v222
    %264 = vmatprep.subr.mxu0 0.0
    %265 = vmatpush1.msra.mxu0 %v221
    %266 = vmatprep.subr.mxu0 0.0
    %267 = vmatpush1.msra.mxu0 %v220
    %268 = vmatprep.subr.mxu0 0.0
    %269 = vmatpush1.msra.mxu0 %v219
    %270 = vmatprep.subr.mxu0 0.0
    %271 = vmatpush1.msra.mxu0 %v218
    %272 = vmatprep.subr.mxu0 0.0
    %273 = vmatpush1.msra.mxu0 %v217
    %274 = vmatprep.subr.mxu0 0.0
    %275 = vmatpush2.msra.mxu0 0.0
    %276 = vmatprep.subr.mxu0 0.0
    %277 = vmatpush2.msra.mxu0 0.0
    %278 = vmatprep.subr.mxu0 0.0
    %279 = vmatpush2.msra.mxu0 0.0
    %280 = vmatprep.subr.mxu0 0.0
    %281 = vmatpush2.msra.mxu0 0.0
    %282 = vmatprep.subr.mxu0 0.0
    %283 = vmatpush2.msra.mxu0 0.0
    %284 = vmatprep.subr.mxu0 0.0
    %285 = vmatpush2.msra.mxu0 0.0
    %286 = vmatprep.subr.mxu0 0.0
    %287 = vmatpush2.msra.mxu0 0.0
    %288 = vmatprep.subr.mxu0 0.0
    %289 = vmatpush2.msra.mxu0 0.0
    %290 = vmatprep.subr.mxu0 0.0
    %291 = vmatpush2.msra.mxu0 0.0
    %292 = vmatprep.subr.mxu0 0.0
    %293 = vmatpush2.msra.mxu0 0.0
    %294 = vmatprep.subr.mxu0 0.0
    %295 = vmatpush2.msra.mxu0 0.0
    %296 = vmatprep.subr.mxu0 0.0
    %297 = vmatpush2.msra.mxu0 0.0
    %298 = vmatprep.subr.mxu0 0.0
    %299 = vmatpush2.msra.mxu0 0.0
    %300 = vmatprep.subr.mxu0 0.0
    %301 = vmatpush2.msra.mxu0 0.0
    %302 = vmatprep.subr.mxu0 0.0
    %303 = vmatpush2.msra.mxu0 0.0
    %304 = vmatprep.subr.mxu0 0.0
    %305 = vmatpush2.msra.mxu0 0.0
    %306 = vmatprep.mubr.f32.mxu0 0.0
    %307 = vmatmul.mubr.f32.gmra.mxu0 %v237
    %v308 = vpop.f32.mrf.mxu0
    %v309 = vadd.f32 %v234, %v308
    %v310 = vpop.f32.mrf.mxu0
    %311 = vmatprep.mubr.f32.mxu0 0.0
    %312 = vmatmul.mubr.f32.gmra.mxu0 %v240
    %v313 = vpop.f32.mrf.mxu0
    %v314 = vadd.f32 %v234, %v313
    %v315 = vpop.f32.mrf.mxu0
    %316 = vdwg.mxu0
    %v317 = vld [vmem:[%s1] sm:$0xff]
    %v318 = vld [vmem:[%s1 + $0x8] sm:$0xff]
    %v319 = vld [vmem:[#allocation6] sm:$0xff]
    %v320 = vld [vmem:[#allocation6 + $0x8] sm:$0xff]
    %v321 = vld [vmem:[#allocation6 + $0x10] sm:$0xff]
    %v322 = vld [vmem:[#allocation6 + $0x18] sm:$0xff]
    %v323 = vld [vmem:[#allocation6 + $0x20] sm:$0xff]
    %v324 = vld [vmem:[#allocation6 + $0x28] sm:$0xff]
    %v325 = vld [vmem:[#allocation6 + $0x30] sm:$0xff]
    %v326 = vld [vmem:[#allocation6 + $0x38] sm:$0xff]
    %v327 = vld [vmem:[#allocation6 + $0x40] sm:$0xff]
    %v328 = vld [vmem:[#allocation6 + $0x48] sm:$0xff]
    %v329 = vld [vmem:[#allocation6 + $0x50] sm:$0xff]
    %v330 = vld [vmem:[#allocation6 + $0x58] sm:$0xff]
    %v331 = vld [vmem:[#allocation9] sm:$0xff]
    %v332 = vld [vmem:[#allocation9 + $0x8] sm:$0xff]
    %v333 = vld [vmem:[#allocation9 + $0x10] sm:$0xff]
    %v334 = vld [vmem:[#allocation9 + $0x18] sm:$0xff]
    %v335 = vld [vmem:[#allocation9 + $0x20] sm:$0xff]
    %v336 = vld [vmem:[#allocation9 + $0x28] sm:$0xff]
    %v337 = vld [vmem:[#allocation9 + $0x30] sm:$0xff]
    %v338 = vld [vmem:[#allocation9 + $0x38] sm:$0xff]
    %v339 = vld [vmem:[#allocation9 + $0x40] sm:$0xff]
    %v340 = vld [vmem:[#allocation9 + $0x48] sm:$0xff]
    %v341 = vld [vmem:[#allocation9 + $0x50] sm:$0xff]
    %v342 = vld [vmem:[#allocation9 + $0x58] sm:$0xff]
    %v344 = vsel %vm133, 0.0, 0
    %346 = vmatprep.subr.mxu0 0.0
    %347 = vmatpush1.msra.mxu0 0.0
    %348 = vmatprep.subr.mxu0 0.0
    %349 = vmatpush1.msra.mxu0 0.0
    %350 = vmatprep.subr.mxu0 0.0
    %351 = vmatpush1.msra.mxu0 0.0
    %352 = vmatprep.subr.mxu0 0.0
    %353 = vmatpush1.msra.mxu0 0.0
    %354 = vmatprep.subr.mxu0 0.0
    %355 = vmatpush1.msra.mxu0 %v330
    %356 = vmatprep.subr.mxu0 0.0
    %357 = vmatpush1.msra.mxu0 %v329
    %358 = vmatprep.subr.mxu0 0.0
    %359 = vmatpush1.msra.mxu0 %v328
    %360 = vmatprep.subr.mxu0 0.0
    %361 = vmatpush1.msra.mxu0 %v327
    %362 = vmatprep.subr.mxu0 0.0
    %363 = vmatpush1.msra.mxu0 %v326
    %364 = vmatprep.subr.mxu0 0.0
    %365 = vmatpush1.msra.mxu0 %v325
    %366 = vmatprep.subr.mxu0 0.0
    %367 = vmatpush1.msra.mxu0 %v324
    %368 = vmatprep.subr.mxu0 0.0
    %369 = vmatpush1.msra.mxu0 %v323
    %370 = vmatprep.subr.mxu0 0.0
    %371 = vmatpush1.msra.mxu0 %v322
    %372 = vmatprep.subr.mxu0 0.0
    %373 = vmatpush1.msra.mxu0 %v321
    %374 = vmatprep.subr.mxu0 0.0
    %375 = vmatpush1.msra.mxu0 %v320
    %376 = vmatprep.subr.mxu0 0.0
    %377 = vmatpush1.msra.mxu0 %v319
    %378 = vmatprep.subr.mxu0 0.0
    %379 = vmatpush2.msra.mxu0 0.0
    %380 = vmatprep.subr.mxu0 0.0
    %381 = vmatpush2.msra.mxu0 0.0
    %382 = vmatprep.subr.mxu0 0.0
    %383 = vmatpush2.msra.mxu0 0.0
    %384 = vmatprep.subr.mxu0 0.0
    %385 = vmatpush2.msra.mxu0 0.0
    %386 = vmatprep.subr.mxu0 0.0
    %387 = vmatpush2.msra.mxu0 0.0
    %388 = vmatprep.subr.mxu0 0.0
    %389 = vmatpush2.msra.mxu0 0.0
    %390 = vmatprep.subr.mxu0 0.0
    %391 = vmatpush2.msra.mxu0 0.0
    %392 = vmatprep.subr.mxu0 0.0
    %393 = vmatpush2.msra.mxu0 0.0
    %394 = vmatprep.subr.mxu0 0.0
    %395 = vmatpush2.msra.mxu0 0.0
    %396 = vmatprep.subr.mxu0 0.0
    %397 = vmatpush2.msra.mxu0 0.0
    %398 = vmatprep.subr.mxu0 0.0
    %399 = vmatpush2.msra.mxu0 0.0
    %400 = vmatprep.subr.mxu0 0.0
    %401 = vmatpush2.msra.mxu0 0.0
    %402 = vmatprep.subr.mxu0 0.0
    %403 = vmatpush2.msra.mxu0 0.0
    %404 = vmatprep.subr.mxu0 0.0
    %405 = vmatpush2.msra.mxu0 0.0
    %406 = vmatprep.subr.mxu0 0.0
    %407 = vmatpush2.msra.mxu0 0.0
    %408 = vmatprep.subr.mxu0 0.0
    %409 = vmatpush2.msra.mxu0 0.0
    %410 = vmatprep.mubr.f32.mxu0 0.0
    %411 = vmatmul.mubr.f32.gmra.mxu0 %v344
    %v412 = vpop.f32.mrf.mxu0
    %v413 = vadd.f32 0.0, %v412
    %v414 = vpop.f32.mrf.mxu0
    %415 = vdwg.mxu0
    %v417 = vrot.slane %v413, 1
    %v420 = vadd.f32 %v207, %v413
    %v421 = vadd.f32 %v212, %v417
    %v422 = vtanh.pop %v420
    %v423 = vtanh.pop %v421
    %v424 = vmul.f32 %v317, %v422
    %v425 = vmul.f32 %v318, %v423
    %v426 = vadd.f32 %v424, 0.0
    %v427 = vadd.f32 %v425, 0.0
    %v430 = vrot.slane %v427, 7
    %vm431 = vcmask 1041409
    %v432 = vsel %vm431, %v430, %v426
    %v433 = vsel %vm133, %v432, 0
    %435 = vmatprep.subr.mxu0 0.0
    %436 = vmatpush1.msra.mxu0 0.0
    %437 = vmatprep.subr.mxu0 0.0
    %438 = vmatpush1.msra.mxu0 0.0
    %439 = vmatprep.subr.mxu0 0.0
    %440 = vmatpush1.msra.mxu0 0.0
    %441 = vmatprep.subr.mxu0 0.0
    %442 = vmatpush1.msra.mxu0 0.0
    %443 = vmatprep.subr.mxu0 0.0
    %444 = vmatpush1.msra.mxu0 %v330
    %445 = vmatprep.subr.mxu0 0.0
    %446 = vmatpush1.msra.mxu0 %v329
    %447 = vmatprep.subr.mxu0 0.0
    %448 = vmatpush1.msra.mxu0 %v328
    %449 = vmatprep.subr.mxu0 0.0
    %450 = vmatpush1.msra.mxu0 %v327
    %451 = vmatprep.subr.mxu0 0.0
    %452 = vmatpush1.msra.mxu0 %v326
    %453 = vmatprep.subr.mxu0 0.0
    %454 = vmatpush1.msra.mxu0 %v325
    %455 = vmatprep.subr.mxu0 0.0
    %456 = vmatpush1.msra.mxu0 %v324
    %457 = vmatprep.subr.mxu0 0.0
    %458 = vmatpush1.msra.mxu0 %v323
    %459 = vmatprep.subr.mxu0 0.0
    %460 = vmatpush1.msra.mxu0 %v322
    %461 = vmatprep.subr.mxu0 0.0
    %462 = vmatpush1.msra.mxu0 %v321
    %463 = vmatprep.subr.mxu0 0.0
    %464 = vmatpush1.msra.mxu0 %v320
    %465 = vmatprep.subr.mxu0 0.0
    %466 = vmatpush1.msra.mxu0 %v319
    %467 = vmatprep.subr.mxu0 0.0
    %468 = vmatpush2.msra.mxu0 0.0
    %469 = vmatprep.subr.mxu0 0.0
    %470 = vmatpush2.msra.mxu0 0.0
    %471 = vmatprep.subr.mxu0 0.0
    %472 = vmatpush2.msra.mxu0 0.0
    %473 = vmatprep.subr.mxu0 0.0
    %474 = vmatpush2.msra.mxu0 0.0
    %475 = vmatprep.subr.mxu0 0.0
    %476 = vmatpush2.msra.mxu0 0.0
    %477 = vmatprep.subr.mxu0 0.0
    %478 = vmatpush2.msra.mxu0 0.0
    %479 = vmatprep.subr.mxu0 0.0
    %480 = vmatpush2.msra.mxu0 0.0
    %481 = vmatprep.subr.mxu0 0.0
    %482 = vmatpush2.msra.mxu0 0.0
    %483 = vmatprep.subr.mxu0 0.0
    %484 = vmatpush2.msra.mxu0 0.0
    %485 = vmatprep.subr.mxu0 0.0
    %486 = vmatpush2.msra.mxu0 0.0
    %487 = vmatprep.subr.mxu0 0.0
    %488 = vmatpush2.msra.mxu0 0.0
    %489 = vmatprep.subr.mxu0 0.0
    %490 = vmatpush2.msra.mxu0 0.0
    %491 = vmatprep.subr.mxu0 0.0
    %492 = vmatpush2.msra.mxu0 0.0
    %493 = vmatprep.subr.mxu0 0.0
    %494 = vmatpush2.msra.mxu0 0.0
    %495 = vmatprep.subr.mxu0 0.0
    %496 = vmatpush2.msra.mxu0 0.0
    %497 = vmatprep.subr.mxu0 0.0
    %498 = vmatpush2.msra.mxu0 0.0
    %499 = vmatprep.mubr.f32.mxu0 0.0
    %500 = vmatmul.mubr.f32.gmra.mxu0 %v433
    %v501 = vpop.f32.mrf.mxu0
    %v502 = vadd.f32 0.0, %v501
    %v503 = vpop.f32.mrf.mxu0
    %504 = vdwg.mxu0
    %v506 = vrot.slane %v502, 7
    %v509 = vadd.f32 %v207, %v506
    %v510 = vadd.f32 %v212, %v502
    %v511 = vtanh.pop %v509
    %v512 = vtanh.pop %v510
    %v513 = vrot.slane %v426, 7
    %v516 = vsub.f32 %v511, %v513
    %v517 = vsub.f32 %v512, %v430
    %v518 = vmul.f32 %v317, %v516
    %v519 = vmul.f32 %v318, %v517
    %v522 = vrot.slane %v518, 1
    %v523 = vrot.slane %v519, 1
    %v526 = vadd.f32 %v426, %v522
    %v527 = vadd.f32 %v427, %v523
    %v530 = vrot.slane %v527, 7
    %v531 = vsel %vm431, %v530, %v526
    %v532 = vsel %vm133, %v531, 0
    %534 = vmatprep.subr.mxu0 0.0
    %535 = vmatpush1.msra.mxu0 0.0
    %536 = vmatprep.subr.mxu0 0.0
    %537 = vmatpush1.msra.mxu0 0.0
    %538 = vmatprep.subr.mxu0 0.0
    %539 = vmatpush1.msra.mxu0 0.0
    %540 = vmatprep.subr.mxu0 0.0
    %541 = vmatpush1.msra.mxu0 0.0
    %542 = vmatprep.subr.mxu0 0.0
    %543 = vmatpush1.msra.mxu0 %v330
    %544 = vmatprep.subr.mxu0 0.0
    %545 = vmatpush1.msra.mxu0 %v329
    %546 = vmatprep.subr.mxu0 0.0
    %547 = vmatpush1.msra.mxu0 %v328
    %548 = vmatprep.subr.mxu0 0.0
    %549 = vmatpush1.msra.mxu0 %v327
    %550 = vmatprep.subr.mxu0 0.0
    %551 = vmatpush1.msra.mxu0 %v326
    %552 = vmatprep.subr.mxu0 0.0
    %553 = vmatpush1.msra.mxu0 %v325
    %554 = vmatprep.subr.mxu0 0.0
    %555 = vmatpush1.msra.mxu0 %v324
    %556 = vmatprep.subr.mxu0 0.0
    %557 = vmatpush1.msra.mxu0 %v323
    %558 = vmatprep.subr.mxu0 0.0
    %559 = vmatpush1.msra.mxu0 %v322
    %560 = vmatprep.subr.mxu0 0.0
    %561 = vmatpush1.msra.mxu0 %v321
    %562 = vmatprep.subr.mxu0 0.0
    %563 = vmatpush1.msra.mxu0 %v320
    %564 = vmatprep.subr.mxu0 0.0
    %565 = vmatpush1.msra.mxu0 %v319
    %566 = vmatprep.subr.mxu0 0.0
    %567 = vmatpush2.msra.mxu0 0.0
    %568 = vmatprep.subr.mxu0 0.0
    %569 = vmatpush2.msra.mxu0 0.0
    %570 = vmatprep.subr.mxu0 0.0
    %571 = vmatpush2.msra.mxu0 0.0
    %572 = vmatprep.subr.mxu0 0.0
    %573 = vmatpush2.msra.mxu0 0.0
    %574 = vmatprep.subr.mxu0 0.0
    %575 = vmatpush2.msra.mxu0 0.0
    %576 = vmatprep.subr.mxu0 0.0
    %577 = vmatpush2.msra.mxu0 0.0
    %578 = vmatprep.subr.mxu0 0.0
    %579 = vmatpush2.msra.mxu0 0.0
    %580 = vmatprep.subr.mxu0 0.0
    %581 = vmatpush2.msra.mxu0 0.0
    %582 = vmatprep.subr.mxu0 0.0
    %583 = vmatpush2.msra.mxu0 0.0
    %584 = vmatprep.subr.mxu0 0.0
    %585 = vmatpush2.msra.mxu0 0.0
    %586 = vmatprep.subr.mxu0 0.0
    %587 = vmatpush2.msra.mxu0 0.0
    %588 = vmatprep.subr.mxu0 0.0
    %589 = vmatpush2.msra.mxu0 0.0
    %590 = vmatprep.subr.mxu0 0.0
    %591 = vmatpush2.msra.mxu0 0.0
    %592 = vmatprep.subr.mxu0 0.0
    %593 = vmatpush2.msra.mxu0 0.0
    %594 = vmatprep.subr.mxu0 0.0
    %595 = vmatpush2.msra.mxu0 0.0
    %596 = vmatprep.subr.mxu0 0.0
    %597 = vmatpush2.msra.mxu0 0.0
    %598 = vmatprep.mubr.f32.mxu0 0.0
    %599 = vmatmul.mubr.f32.gmra.mxu0 %v532
    %v600 = vpop.f32.mrf.mxu0
    %v601 = vadd.f32 0.0, %v600
    %v602 = vpop.f32.mrf.mxu0
    %603 = vdwg.mxu0
    %v605 = vrot.slane %v601, 6
    %v606 = vrot.slane %v601, 7
    %v609 = vadd.f32 %v207, %v605
    %v610 = vadd.f32 %v212, %v606
    %v611 = vtanh.pop %v609
    %v612 = vtanh.pop %v610
    %v613 = vrot.slane %v526, 6
    %v614 = vrot.slane %v527, 6
    %v617 = vsub.f32 %v611, %v613
    %v618 = vsub.f32 %v612, %v614
    %v619 = vmul.f32 %v317, %v617
    %v620 = vmul.f32 %v318, %v618
    %v623 = vrot.slane %v619, 2
    %v624 = vrot.slane %v620, 2
    %v627 = vadd.f32 %v526, %v623
    %v628 = vadd.f32 %v527, %v624
    %v631 = vrot.slane %v628, 7
    %v632 = vsel %vm431, %v631, %v627
    %v633 = vsel %vm133, %v632, 0
    %635 = vmatprep.subr.mxu0 0.0
    %636 = vmatpush1.msra.mxu0 0.0
    %637 = vmatprep.subr.mxu0 0.0
    %638 = vmatpush1.msra.mxu0 0.0
    %639 = vmatprep.subr.mxu0 0.0
    %640 = vmatpush1.msra.mxu0 0.0
    %641 = vmatprep.subr.mxu0 0.0
    %642 = vmatpush1.msra.mxu0 0.0
    %643 = vmatprep.subr.mxu0 0.0
    %644 = vmatpush1.msra.mxu0 %v330
    %645 = vmatprep.subr.mxu0 0.0
    %646 = vmatpush1.msra.mxu0 %v329
    %647 = vmatprep.subr.mxu0 0.0
    %648 = vmatpush1.msra.mxu0 %v328
    %649 = vmatprep.subr.mxu0 0.0
    %650 = vmatpush1.msra.mxu0 %v327
    %651 = vmatprep.subr.mxu0 0.0
    %652 = vmatpush1.msra.mxu0 %v326
    %653 = vmatprep.subr.mxu0 0.0
    %654 = vmatpush1.msra.mxu0 %v325
    %655 = vmatprep.subr.mxu0 0.0
    %656 = vmatpush1.msra.mxu0 %v324
    %657 = vmatprep.subr.mxu0 0.0
    %658 = vmatpush1.msra.mxu0 %v323
    %659 = vmatprep.subr.mxu0 0.0
    %660 = vmatpush1.msra.mxu0 %v322
    %661 = vmatprep.subr.mxu0 0.0
    %662 = vmatpush1.msra.mxu0 %v321
    %663 = vmatprep.subr.mxu0 0.0
    %664 = vmatpush1.msra.mxu0 %v320
    %665 = vmatprep.subr.mxu0 0.0
    %666 = vmatpush1.msra.mxu0 %v319
    %667 = vmatprep.subr.mxu0 0.0
    %668 = vmatpush2.msra.mxu0 0.0
    %669 = vmatprep.subr.mxu0 0.0
    %670 = vmatpush2.msra.mxu0 0.0
    %671 = vmatprep.subr.mxu0 0.0
    %672 = vmatpush2.msra.mxu0 0.0
    %673 = vmatprep.subr.mxu0 0.0
    %674 = vmatpush2.msra.mxu0 0.0
    %675 = vmatprep.subr.mxu0 0.0
    %676 = vmatpush2.msra.mxu0 0.0
    %677 = vmatprep.subr.mxu0 0.0
    %678 = vmatpush2.msra.mxu0 0.0
    %679 = vmatprep.subr.mxu0 0.0
    %680 = vmatpush2.msra.mxu0 0.0
    %681 = vmatprep.subr.mxu0 0.0
    %682 = vmatpush2.msra.mxu0 0.0
    %683 = vmatprep.subr.mxu0 0.0
    %684 = vmatpush2.msra.mxu0 0.0
    %685 = vmatprep.subr.mxu0 0.0
    %686 = vmatpush2.msra.mxu0 0.0
    %687 = vmatprep.subr.mxu0 0.0
    %688 = vmatpush2.msra.mxu0 0.0
    %689 = vmatprep.subr.mxu0 0.0
    %690 = vmatpush2.msra.mxu0 0.0
    %691 = vmatprep.subr.mxu0 0.0
    %692 = vmatpush2.msra.mxu0 0.0
    %693 = vmatprep.subr.mxu0 0.0
    %694 = vmatpush2.msra.mxu0 0.0
    %695 = vmatprep.subr.mxu0 0.0
    %696 = vmatpush2.msra.mxu0 0.0
    %697 = vmatprep.subr.mxu0 0.0
    %698 = vmatpush2.msra.mxu0 0.0
    %699 = vmatprep.mubr.f32.mxu0 0.0
    %700 = vmatmul.mubr.f32.gmra.mxu0 %v633
    %v701 = vpop.f32.mrf.mxu0
    %v702 = vadd.f32 0.0, %v701
    %v703 = vpop.f32.mrf.mxu0
    %704 = vdwg.mxu0
    %v706 = vrot.slane %v702, 5
    %v707 = vrot.slane %v702, 6
    %v710 = vadd.f32 %v207, %v706
    %v711 = vadd.f32 %v212, %v707
    %v712 = vtanh.pop %v710
    %v713 = vtanh.pop %v711
    %v714 = vrot.slane %v627, 5
    %v715 = vrot.slane %v628, 5
    %v718 = vsub.f32 %v712, %v714
    %v719 = vsub.f32 %v713, %v715
    %v720 = vmul.f32 %v317, %v718
    %v721 = vmul.f32 %v318, %v719
    %v724 = vrot.slane %v720, 3
    %v725 = vrot.slane %v721, 3
    %v728 = vadd.f32 %v627, %v724
    %v729 = vadd.f32 %v628, %v725
    %v732 = vrot.slane %v729, 7
    %v733 = vsel %vm431, %v732, %v728
    %v734 = vsel %vm133, %v733, 0
    %736 = vmatprep.subr.mxu0 0.0
    %737 = vmatpush1.msra.mxu0 0.0
    %738 = vmatprep.subr.mxu0 0.0
    %739 = vmatpush1.msra.mxu0 0.0
    %740 = vmatprep.subr.mxu0 0.0
    %741 = vmatpush1.msra.mxu0 0.0
    %742 = vmatprep.subr.mxu0 0.0
    %743 = vmatpush1.msra.mxu0 0.0
    %744 = vmatprep.subr.mxu0 0.0
    %745 = vmatpush1.msra.mxu0 %v330
    %746 = vmatprep.subr.mxu0 0.0
    %747 = vmatpush1.msra.mxu0 %v329
    %748 = vmatprep.subr.mxu0 0.0
    %749 = vmatpush1.msra.mxu0 %v328
    %750 = vmatprep.subr.mxu0 0.0
    %751 = vmatpush1.msra.mxu0 %v327
    %752 = vmatprep.subr.mxu0 0.0
    %753 = vmatpush1.msra.mxu0 %v326
    %754 = vmatprep.subr.mxu0 0.0
    %755 = vmatpush1.msra.mxu0 %v325
    %756 = vmatprep.subr.mxu0 0.0
    %757 = vmatpush1.msra.mxu0 %v324
    %758 = vmatprep.subr.mxu0 0.0
    %759 = vmatpush1.msra.mxu0 %v323
    %760 = vmatprep.subr.mxu0 0.0
    %761 = vmatpush1.msra.mxu0 %v322
    %762 = vmatprep.subr.mxu0 0.0
    %763 = vmatpush1.msra.mxu0 %v321
    %764 = vmatprep.subr.mxu0 0.0
    %765 = vmatpush1.msra.mxu0 %v320
    %766 = vmatprep.subr.mxu0 0.0
    %767 = vmatpush1.msra.mxu0 %v319
    %768 = vmatprep.subr.mxu0 0.0
    %769 = vmatpush2.msra.mxu0 0.0
    %770 = vmatprep.subr.mxu0 0.0
    %771 = vmatpush2.msra.mxu0 0.0
    %772 = vmatprep.subr.mxu0 0.0
    %773 = vmatpush2.msra.mxu0 0.0
    %774 = vmatprep.subr.mxu0 0.0
    %775 = vmatpush2.msra.mxu0 0.0
    %776 = vmatprep.subr.mxu0 0.0
    %777 = vmatpush2.msra.mxu0 0.0
    %778 = vmatprep.subr.mxu0 0.0
    %779 = vmatpush2.msra.mxu0 0.0
    %780 = vmatprep.subr.mxu0 0.0
    %781 = vmatpush2.msra.mxu0 0.0
    %782 = vmatprep.subr.mxu0 0.0
    %783 = vmatpush2.msra.mxu0 0.0
    %784 = vmatprep.subr.mxu0 0.0
    %785 = vmatpush2.msra.mxu0 0.0
    %786 = vmatprep.subr.mxu0 0.0
    %787 = vmatpush2.msra.mxu0 0.0
    %788 = vmatprep.subr.mxu0 0.0
    %789 = vmatpush2.msra.mxu0 0.0
    %790 = vmatprep.subr.mxu0 0.0
    %791 = vmatpush2.msra.mxu0 0.0
    %792 = vmatprep.subr.mxu0 0.0
    %793 = vmatpush2.msra.mxu0 0.0
    %794 = vmatprep.subr.mxu0 0.0
    %795 = vmatpush2.msra.mxu0 0.0
    %796 = vmatprep.subr.mxu0 0.0
    %797 = vmatpush2.msra.mxu0 0.0
    %798 = vmatprep.subr.mxu0 0.0
    %799 = vmatpush2.msra.mxu0 0.0
    %800 = vmatprep.mubr.f32.mxu0 0.0
    %801 = vmatmul.mubr.f32.gmra.mxu0 %v734
    %v802 = vpop.f32.mrf.mxu0
    %v803 = vadd.f32 0.0, %v802
    %v804 = vpop.f32.mrf.mxu0
    %805 = vdwg.mxu0
    %v807 = vrot.slane %v803, 4
    %v808 = vrot.slane %v803, 5
    %v811 = vadd.f32 %v207, %v807
    %v812 = vadd.f32 %v212, %v808
    %v813 = vtanh.pop %v811
    %v814 = vtanh.pop %v812
    %v815 = vrot.slane %v728, 4
    %v816 = vrot.slane %v729, 4
    %v819 = vsub.f32 %v813, %v815
    %v820 = vsub.f32 %v814, %v816
    %v821 = vmul.f32 %v317, %v819
    %v822 = vmul.f32 %v318, %v820
    %v825 = vrot.slane %v821, 4
    %v826 = vrot.slane %v822, 4
    %v829 = vadd.f32 %v728, %v825
    %v830 = vadd.f32 %v729, %v826
    %v833 = vrot.slane %v830, 7
    %v834 = vsel %vm431, %v833, %v829
    %v835 = vsel %vm133, %v834, 0
    %837 = vmatprep.subr.mxu0 0.0
    %838 = vmatpush1.msra.mxu0 0.0
    %839 = vmatprep.subr.mxu0 0.0
    %840 = vmatpush1.msra.mxu0 0.0
    %841 = vmatprep.subr.mxu0 0.0
    %842 = vmatpush1.msra.mxu0 0.0
    %843 = vmatprep.subr.mxu0 0.0
    %844 = vmatpush1.msra.mxu0 0.0
    %845 = vmatprep.subr.mxu0 0.0
    %846 = vmatpush1.msra.mxu0 %v330
    %847 = vmatprep.subr.mxu0 0.0
    %848 = vmatpush1.msra.mxu0 %v329
    %849 = vmatprep.subr.mxu0 0.0
    %850 = vmatpush1.msra.mxu0 %v328
    %851 = vmatprep.subr.mxu0 0.0
    %852 = vmatpush1.msra.mxu0 %v327
    %853 = vmatprep.subr.mxu0 0.0
    %854 = vmatpush1.msra.mxu0 %v326
    %855 = vmatprep.subr.mxu0 0.0
    %856 = vmatpush1.msra.mxu0 %v325
    %857 = vmatprep.subr.mxu0 0.0
    %858 = vmatpush1.msra.mxu0 %v324
    %859 = vmatprep.subr.mxu0 0.0
    %860 = vmatpush1.msra.mxu0 %v323
    %861 = vmatprep.subr.mxu0 0.0
    %862 = vmatpush1.msra.mxu0 %v322
    %863 = vmatprep.subr.mxu0 0.0
    %864 = vmatpush1.msra.mxu0 %v321
    %865 = vmatprep.subr.mxu0 0.0
    %866 = vmatpush1.msra.mxu0 %v320
    %867 = vmatprep.subr.mxu0 0.0
    %868 = vmatpush1.msra.mxu0 %v319
    %869 = vmatprep.subr.mxu0 0.0
    %870 = vmatpush2.msra.mxu0 0.0
    %871 = vmatprep.subr.mxu0 0.0
    %872 = vmatpush2.msra.mxu0 0.0
    %873 = vmatprep.subr.mxu0 0.0
    %874 = vmatpush2.msra.mxu0 0.0
    %875 = vmatprep.subr.mxu0 0.0
    %876 = vmatpush2.msra.mxu0 0.0
    %877 = vmatprep.subr.mxu0 0.0
    %878 = vmatpush2.msra.mxu0 0.0
    %879 = vmatprep.subr.mxu0 0.0
    %880 = vmatpush2.msra.mxu0 0.0
    %881 = vmatprep.subr.mxu0 0.0
    %882 = vmatpush2.msra.mxu0 0.0
    %883 = vmatprep.subr.mxu0 0.0
    %884 = vmatpush2.msra.mxu0 0.0
    %885 = vmatprep.subr.mxu0 0.0
    %886 = vmatpush2.msra.mxu0 0.0
    %887 = vmatprep.subr.mxu0 0.0
    %888 = vmatpush2.msra.mxu0 0.0
    %889 = vmatprep.subr.mxu0 0.0
    %890 = vmatpush2.msra.mxu0 0.0
    %891 = vmatprep.subr.mxu0 0.0
    %892 = vmatpush2.msra.mxu0 0.0
    %893 = vmatprep.subr.mxu0 0.0
    %894 = vmatpush2.msra.mxu0 0.0
    %895 = vmatprep.subr.mxu0 0.0
    %896 = vmatpush2.msra.mxu0 0.0
    %897 = vmatprep.subr.mxu0 0.0
    %898 = vmatpush2.msra.mxu0 0.0
    %899 = vmatprep.subr.mxu0 0.0
    %900 = vmatpush2.msra.mxu0 0.0
    %901 = vmatprep.mubr.f32.mxu0 0.0
    %902 = vmatmul.mubr.f32.gmra.mxu0 %v835
    %v903 = vpop.f32.mrf.mxu0
    %v904 = vadd.f32 0.0, %v903
    %v905 = vpop.f32.mrf.mxu0
    %906 = vdwg.mxu0
    %v908 = vrot.slane %v904, 3
    %v909 = vrot.slane %v904, 4
    %v912 = vadd.f32 %v207, %v908
    %v913 = vadd.f32 %v212, %v909
    %v914 = vtanh.pop %v912
    %v915 = vtanh.pop %v913
    %v916 = vrot.slane %v829, 3
    %v917 = vrot.slane %v830, 3
    %v920 = vsub.f32 %v914, %v916
    %v921 = vsub.f32 %v915, %v917
    %v922 = vmul.f32 %v317, %v920
    %v923 = vmul.f32 %v318, %v921
    %v926 = vrot.slane %v922, 5
    %v927 = vrot.slane %v923, 5
    %v930 = vadd.f32 %v829, %v926
    %v931 = vadd.f32 %v830, %v927
    %v934 = vrot.slane %v931, 7
    %v935 = vsel %vm431, %v934, %v930
    %v936 = vsel %vm133, %v935, 0
    %938 = vmatprep.subr.mxu0 0.0
    %939 = vmatpush1.msra.mxu0 0.0
    %940 = vmatprep.subr.mxu0 0.0
    %941 = vmatpush1.msra.mxu0 0.0
    %942 = vmatprep.subr.mxu0 0.0
    %943 = vmatpush1.msra.mxu0 0.0
    %944 = vmatprep.subr.mxu0 0.0
    %945 = vmatpush1.msra.mxu0 0.0
    %946 = vmatprep.subr.mxu0 0.0
    %947 = vmatpush1.msra.mxu0 %v330
    %948 = vmatprep.subr.mxu0 0.0
    %949 = vmatpush1.msra.mxu0 %v329
    %950 = vmatprep.subr.mxu0 0.0
    %951 = vmatpush1.msra.mxu0 %v328
    %952 = vmatprep.subr.mxu0 0.0
    %953 = vmatpush1.msra.mxu0 %v327
    %954 = vmatprep.subr.mxu0 0.0
    %955 = vmatpush1.msra.mxu0 %v326
    %956 = vmatprep.subr.mxu0 0.0
    %957 = vmatpush1.msra.mxu0 %v325
    %958 = vmatprep.subr.mxu0 0.0
    %959 = vmatpush1.msra.mxu0 %v324
    %960 = vmatprep.subr.mxu0 0.0
    %961 = vmatpush1.msra.mxu0 %v323
    %962 = vmatprep.subr.mxu0 0.0
    %963 = vmatpush1.msra.mxu0 %v322
    %964 = vmatprep.subr.mxu0 0.0
    %965 = vmatpush1.msra.mxu0 %v321
    %966 = vmatprep.subr.mxu0 0.0
    %967 = vmatpush1.msra.mxu0 %v320
    %968 = vmatprep.subr.mxu0 0.0
    %969 = vmatpush1.msra.mxu0 %v319
    %970 = vmatprep.subr.mxu0 0.0
    %971 = vmatpush2.msra.mxu0 0.0
    %972 = vmatprep.subr.mxu0 0.0
    %973 = vmatpush2.msra.mxu0 0.0
    %974 = vmatprep.subr.mxu0 0.0
    %975 = vmatpush2.msra.mxu0 0.0
    %976 = vmatprep.subr.mxu0 0.0
    %977 = vmatpush2.msra.mxu0 0.0
    %978 = vmatprep.subr.mxu0 0.0
    %979 = vmatpush2.msra.mxu0 0.0
    %980 = vmatprep.subr.mxu0 0.0
    %981 = vmatpush2.msra.mxu0 0.0
    %982 = vmatprep.subr.mxu0 0.0
    %983 = vmatpush2.msra.mxu0 0.0
    %984 = vmatprep.subr.mxu0 0.0
    %985 = vmatpush2.msra.mxu0 0.0
    %986 = vmatprep.subr.mxu0 0.0
    %987 = vmatpush2.msra.mxu0 0.0
    %988 = vmatprep.subr.mxu0 0.0
    %989 = vmatpush2.msra.mxu0 0.0
    %990 = vmatprep.subr.mxu0 0.0
    %991 = vmatpush2.msra.mxu0 0.0
    %992 = vmatprep.subr.mxu0 0.0
    %993 = vmatpush2.msra.mxu0 0.0
    %994 = vmatprep.subr.mxu0 0.0
    %995 = vmatpush2.msra.mxu0 0.0
    %996 = vmatprep.subr.mxu0 0.0
    %997 = vmatpush2.msra.mxu0 0.0
    %998 = vmatprep.subr.mxu0 0.0
    %999 = vmatpush2.msra.mxu0 0.0
    %1000 = vmatprep.subr.mxu0 0.0
    %1001 = vmatpush2.msra.mxu0 0.0
    %1002 = vmatprep.mubr.f32.mxu0 0.0
    %1003 = vmatmul.mubr.f32.gmra.mxu0 %v936
    %v1004 = vpop.f32.mrf.mxu0
    %v1005 = vadd.f32 0.0, %v1004
    %v1006 = vpop.f32.mrf.mxu0
    %1007 = vdwg.mxu0
    %v1009 = vrot.slane %v1005, 2
    %v1010 = vrot.slane %v1005, 3
    %v1013 = vadd.f32 %v207, %v1009
    %v1014 = vadd.f32 %v212, %v1010
    %v1015 = vtanh.pop %v1013
    %v1016 = vtanh.pop %v1014
    %v1017 = vrot.slane %v930, 2
    %v1018 = vrot.slane %v931, 2
    %v1021 = vsub.f32 %v1015, %v1017
    %v1022 = vsub.f32 %v1016, %v1018
    %v1023 = vmul.f32 %v317, %v1021
    %v1024 = vmul.f32 %v318, %v1022
    %v1027 = vrot.slane %v1023, 6
    %v1028 = vrot.slane %v1024, 6
    %v1031 = vadd.f32 %v930, %v1027
    %v1032 = vadd.f32 %v931, %v1028
    %v1035 = vrot.slane %v1032, 7
    %v1036 = vsel %vm431, %v1035, %v1031
    %v1037 = vsel %vm133, %v1036, 0
    %1039 = vmatprep.subr.mxu0 0.0
    %1040 = vmatpush1.msra.mxu0 0.0
    %1041 = vmatprep.subr.mxu0 0.0
    %1042 = vmatpush1.msra.mxu0 0.0
    %1043 = vmatprep.subr.mxu0 0.0
    %1044 = vmatpush1.msra.mxu0 0.0
    %1045 = vmatprep.subr.mxu0 0.0
    %1046 = vmatpush1.msra.mxu0 0.0
    %1047 = vmatprep.subr.mxu0 0.0
    %1048 = vmatpush1.msra.mxu0 %v330
    %1049 = vmatprep.subr.mxu0 0.0
    %1050 = vmatpush1.msra.mxu0 %v329
    %1051 = vmatprep.subr.mxu0 0.0
    %1052 = vmatpush1.msra.mxu0 %v328
    %1053 = vmatprep.subr.mxu0 0.0
    %1054 = vmatpush1.msra.mxu0 %v327
    %1055 = vmatprep.subr.mxu0 0.0
    %1056 = vmatpush1.msra.mxu0 %v326
    %1057 = vmatprep.subr.mxu0 0.0
    %1058 = vmatpush1.msra.mxu0 %v325
    %1059 = vmatprep.subr.mxu0 0.0
    %1060 = vmatpush1.msra.mxu0 %v324
    %1061 = vmatprep.subr.mxu0 0.0
    %1062 = vmatpush1.msra.mxu0 %v323
    %1063 = vmatprep.subr.mxu0 0.0
    %1064 = vmatpush1.msra.mxu0 %v322
    %1065 = vmatprep.subr.mxu0 0.0
    %1066 = vmatpush1.msra.mxu0 %v321
    %1067 = vmatprep.subr.mxu0 0.0
    %1068 = vmatpush1.msra.mxu0 %v320
    %1069 = vmatprep.subr.mxu0 0.0
    %1070 = vmatpush1.msra.mxu0 %v319
    %1071 = vmatprep.subr.mxu0 0.0
    %1072 = vmatpush2.msra.mxu0 0.0
    %1073 = vmatprep.subr.mxu0 0.0
    %1074 = vmatpush2.msra.mxu0 0.0
    %1075 = vmatprep.subr.mxu0 0.0
    %1076 = vmatpush2.msra.mxu0 0.0
    %1077 = vmatprep.subr.mxu0 0.0
    %1078 = vmatpush2.msra.mxu0 0.0
    %1079 = vmatprep.subr.mxu0 0.0
    %1080 = vmatpush2.msra.mxu0 0.0
    %1081 = vmatprep.subr.mxu0 0.0
    %1082 = vmatpush2.msra.mxu0 0.0
    %1083 = vmatprep.subr.mxu0 0.0
    %1084 = vmatpush2.msra.mxu0 0.0
    %1085 = vmatprep.subr.mxu0 0.0
    %1086 = vmatpush2.msra.mxu0 0.0
    %1087 = vmatprep.subr.mxu0 0.0
    %1088 = vmatpush2.msra.mxu0 0.0
    %1089 = vmatprep.subr.mxu0 0.0
    %1090 = vmatpush2.msra.mxu0 0.0
    %1091 = vmatprep.subr.mxu0 0.0
    %1092 = vmatpush2.msra.mxu0 0.0
    %1093 = vmatprep.subr.mxu0 0.0
    %1094 = vmatpush2.msra.mxu0 0.0
    %1095 = vmatprep.subr.mxu0 0.0
    %1096 = vmatpush2.msra.mxu0 0.0
    %1097 = vmatprep.subr.mxu0 0.0
    %1098 = vmatpush2.msra.mxu0 0.0
    %1099 = vmatprep.subr.mxu0 0.0
    %1100 = vmatpush2.msra.mxu0 0.0
    %1101 = vmatprep.subr.mxu0 0.0
    %1102 = vmatpush2.msra.mxu0 0.0
    %1103 = vmatprep.mubr.f32.mxu0 0.0
    %1104 = vmatmul.mubr.f32.gmra.mxu0 %v1037
    %v1105 = vpop.f32.mrf.mxu0
    %v1106 = vadd.f32 0.0, %v1105
    %v1107 = vpop.f32.mrf.mxu0
    %1108 = vdwg.mxu0
    %v1110 = vrot.slane %v1106, 1
    %v1111 = vrot.slane %v1106, 2
    %v1114 = vadd.f32 %v207, %v1110
    %v1115 = vadd.f32 %v212, %v1111
    %v1116 = vtanh.pop %v1114
    %v1117 = vtanh.pop %v1115
    %v1118 = vrot.slane %v1031, 1
    %v1119 = vrot.slane %v1032, 1
    %v1122 = vsub.f32 %v1116, %v1118
    %v1123 = vsub.f32 %v1117, %v1119
    %v1124 = vmul.f32 %v317, %v1122
    %v1125 = vmul.f32 %v318, %v1123
    %v1128 = vrot.slane %v1124, 7
    %v1129 = vrot.slane %v1125, 7
    %v1132 = vadd.f32 %v1031, %v1128
    %v1133 = vadd.f32 %v1032, %v1129
    %v1136 = vrot.slane %v1133, 7
    %v1137 = vsel %vm431, %v1136, %v1132
    %v1138 = vsel %vm133, %v1137, 0
    %1140 = vmatprep.subr.mxu0 0.0
    %1141 = vmatpush1.msra.mxu0 0.0
    %1142 = vmatprep.subr.mxu0 0.0
    %1143 = vmatpush1.msra.mxu0 0.0
    %1144 = vmatprep.subr.mxu0 0.0
    %1145 = vmatpush1.msra.mxu0 0.0
    %1146 = vmatprep.subr.mxu0 0.0
    %1147 = vmatpush1.msra.mxu0 0.0
    %1148 = vmatprep.subr.mxu0 0.0
    %1149 = vmatpush1.msra.mxu0 %v342
    %1150 = vmatprep.subr.mxu0 0.0
    %1151 = vmatpush1.msra.mxu0 %v341
    %1152 = vmatprep.subr.mxu0 0.0
    %1153 = vmatpush1.msra.mxu0 %v340
    %1154 = vmatprep.subr.mxu0 0.0
    %1155 = vmatpush1.msra.mxu0 %v339
    %1156 = vmatprep.subr.mxu0 0.0
    %1157 = vmatpush1.msra.mxu0 %v338
    %1158 = vmatprep.subr.mxu0 0.0
    %1159 = vmatpush1.msra.mxu0 %v337
    %1160 = vmatprep.subr.mxu0 0.0
    %1161 = vmatpush1.msra.mxu0 %v336
    %1162 = vmatprep.subr.mxu0 0.0
    %1163 = vmatpush1.msra.mxu0 %v335
    %1164 = vmatprep.subr.mxu0 0.0
    %1165 = vmatpush1.msra.mxu0 %v334
    %1166 = vmatprep.subr.mxu0 0.0
    %1167 = vmatpush1.msra.mxu0 %v333
    %1168 = vmatprep.subr.mxu0 0.0
    %1169 = vmatpush1.msra.mxu0 %v332
    %1170 = vmatprep.subr.mxu0 0.0
    %1171 = vmatpush1.msra.mxu0 %v331
    %1172 = vmatprep.subr.mxu0 0.0
    %1173 = vmatpush2.msra.mxu0 0.0
    %1174 = vmatprep.subr.mxu0 0.0
    %1175 = vmatpush2.msra.mxu0 0.0
    %1176 = vmatprep.subr.mxu0 0.0
    %1177 = vmatpush2.msra.mxu0 0.0
    %1178 = vmatprep.subr.mxu0 0.0
    %1179 = vmatpush2.msra.mxu0 0.0
    %1180 = vmatprep.subr.mxu0 0.0
    %1181 = vmatpush2.msra.mxu0 0.0
    %1182 = vmatprep.subr.mxu0 0.0
    %1183 = vmatpush2.msra.mxu0 0.0
    %1184 = vmatprep.subr.mxu0 0.0
    %1185 = vmatpush2.msra.mxu0 0.0
    %1186 = vmatprep.subr.mxu0 0.0
    %1187 = vmatpush2.msra.mxu0 0.0
    %1188 = vmatprep.subr.mxu0 0.0
    %1189 = vmatpush2.msra.mxu0 0.0
    %1190 = vmatprep.subr.mxu0 0.0
    %1191 = vmatpush2.msra.mxu0 0.0
    %1192 = vmatprep.subr.mxu0 0.0
    %1193 = vmatpush2.msra.mxu0 0.0
    %1194 = vmatprep.subr.mxu0 0.0
    %1195 = vmatpush2.msra.mxu0 0.0
    %1196 = vmatprep.subr.mxu0 0.0
    %1197 = vmatpush2.msra.mxu0 0.0
    %1198 = vmatprep.subr.mxu0 0.0
    %1199 = vmatpush2.msra.mxu0 0.0
    %1200 = vmatprep.subr.mxu0 0.0
    %1201 = vmatpush2.msra.mxu0 0.0
    %1202 = vmatprep.subr.mxu0 0.0
    %1203 = vmatpush2.msra.mxu0 0.0
    %1204 = vmatprep.mubr.f32.mxu0 0.0
    %1205 = vmatmul.mubr.f32.gmra.mxu0 %v1138
    %v1206 = vpop.f32.mrf.mxu0
    %v1207 = vadd.f32 0.0, %v1206
    %v1208 = vpop.f32.mrf.mxu0
    %1209 = vdwg.mxu0
    %v1211 = vrot.slane %v1207, 1
    %v1214 = vadd.f32 %v309, %v1207
    %v1215 = vadd.f32 %v314, %v1211
    %v1216 = vtanh.pop %v1214
    %v1217 = vtanh.pop %v1215
    %vm1218 = vcmask 778240
    %1219 = vst.msk [vmem:[#allocation2] sm:$0x1] %vm1218, %v1216
    %1220 = vst.msk [vmem:[#allocation2 + $0x8] sm:$0x1] %vm1218, %v1217
    %v1223 = vrot.slane %v1217, 7
    %v1224 = vsel %vm431, %v1223, %v1216
    %v1225 = vsel %vm133, %v1224, 0
    %1227 = vmatprep.subr.mxu0 0.0
    %1228 = vmatpush1.msra.mxu0 0.0
    %1229 = vmatprep.subr.mxu0 0.0
    %1230 = vmatpush1.msra.mxu0 0.0
    %1231 = vmatprep.subr.mxu0 0.0
    %1232 = vmatpush1.msra.mxu0 0.0
    %1233 = vmatprep.subr.mxu0 0.0
    %1234 = vmatpush1.msra.mxu0 0.0
    %1235 = vmatprep.subr.mxu0 0.0
    %1236 = vmatpush1.msra.mxu0 %v342
    %1237 = vmatprep.subr.mxu0 0.0
    %1238 = vmatpush1.msra.mxu0 %v341
    %1239 = vmatprep.subr.mxu0 0.0
    %1240 = vmatpush1.msra.mxu0 %v340
    %1241 = vmatprep.subr.mxu0 0.0
    %1242 = vmatpush1.msra.mxu0 %v339
    %1243 = vmatprep.subr.mxu0 0.0
    %1244 = vmatpush1.msra.mxu0 %v338
    %1245 = vmatprep.subr.mxu0 0.0
    %1246 = vmatpush1.msra.mxu0 %v337
    %1247 = vmatprep.subr.mxu0 0.0
    %1248 = vmatpush1.msra.mxu0 %v336
    %1249 = vmatprep.subr.mxu0 0.0
    %1250 = vmatpush1.msra.mxu0 %v335
    %1251 = vmatprep.subr.mxu0 0.0
    %1252 = vmatpush1.msra.mxu0 %v334
    %1253 = vmatprep.subr.mxu0 0.0
    %1254 = vmatpush1.msra.mxu0 %v333
    %1255 = vmatprep.subr.mxu0 0.0
    %1256 = vmatpush1.msra.mxu0 %v332
    %1257 = vmatprep.subr.mxu0 0.0
    %1258 = vmatpush1.msra.mxu0 %v331
    %1259 = vmatprep.subr.mxu0 0.0
    %1260 = vmatpush2.msra.mxu0 0.0
    %1261 = vmatprep.subr.mxu0 0.0
    %1262 = vmatpush2.msra.mxu0 0.0
    %1263 = vmatprep.subr.mxu0 0.0
    %1264 = vmatpush2.msra.mxu0 0.0
    %1265 = vmatprep.subr.mxu0 0.0
    %1266 = vmatpush2.msra.mxu0 0.0
    %1267 = vmatprep.subr.mxu0 0.0
    %1268 = vmatpush2.msra.mxu0 0.0
    %1269 = vmatprep.subr.mxu0 0.0
    %1270 = vmatpush2.msra.mxu0 0.0
    %1271 = vmatprep.subr.mxu0 0.0
    %1272 = vmatpush2.msra.mxu0 0.0
    %1273 = vmatprep.subr.mxu0 0.0
    %1274 = vmatpush2.msra.mxu0 0.0
    %1275 = vmatprep.subr.mxu0 0.0
    %1276 = vmatpush2.msra.mxu0 0.0
    %1277 = vmatprep.subr.mxu0 0.0
    %1278 = vmatpush2.msra.mxu0 0.0
    %1279 = vmatprep.subr.mxu0 0.0
    %1280 = vmatpush2.msra.mxu0 0.0
    %1281 = vmatprep.subr.mxu0 0.0
    %1282 = vmatpush2.msra.mxu0 0.0
    %1283 = vmatprep.subr.mxu0 0.0
    %1284 = vmatpush2.msra.mxu0 0.0
    %1285 = vmatprep.subr.mxu0 0.0
    %1286 = vmatpush2.msra.mxu0 0.0
    %1287 = vmatprep.subr.mxu0 0.0
    %1288 = vmatpush2.msra.mxu0 0.0
    %1289 = vmatprep.subr.mxu0 0.0
    %1290 = vmatpush2.msra.mxu0 0.0
    %1291 = vmatprep.mubr.f32.mxu0 0.0
    %1292 = vmatmul.mubr.f32.gmra.mxu0 %v1225
    %v1293 = vpop.f32.mrf.mxu0
    %v1294 = vadd.f32 0.0, %v1293
    %v1295 = vpop.f32.mrf.mxu0
    %1296 = vdwg.mxu0
    %v1298 = vrot.slane %v1294, 7
    %v1301 = vadd.f32 %v309, %v1298
    %v1302 = vadd.f32 %v314, %v1294
    %v1303 = vtanh.pop %v1301
    %v1304 = vtanh.pop %v1302
    %vm1305 = vcmask 779265
    %1306 = vst.msk [vmem:[#allocation2] sm:$0x2] %vm1305, %v1303
    %1307 = vst.msk [vmem:[#allocation2 + $0x8] sm:$0x2] %vm1305, %v1304
    %v1310 = vrot.slane %v1303, 1
    %v1311 = vsel %vm431, %v1304, %v1310
    %v1312 = vsel %vm133, %v1311, 0
    %1314 = vmatprep.subr.mxu0 0.0
    %1315 = vmatpush1.msra.mxu0 0.0
    %1316 = vmatprep.subr.mxu0 0.0
    %1317 = vmatpush1.msra.mxu0 0.0
    %1318 = vmatprep.subr.mxu0 0.0
    %1319 = vmatpush1.msra.mxu0 0.0
    %1320 = vmatprep.subr.mxu0 0.0
    %1321 = vmatpush1.msra.mxu0 0.0
    %1322 = vmatprep.subr.mxu0 0.0
    %1323 = vmatpush1.msra.mxu0 %v342
    %1324 = vmatprep.subr.mxu0 0.0
    %1325 = vmatpush1.msra.mxu0 %v341
    %1326 = vmatprep.subr.mxu0 0.0
    %1327 = vmatpush1.msra.mxu0 %v340
    %1328 = vmatprep.subr.mxu0 0.0
    %1329 = vmatpush1.msra.mxu0 %v339
    %1330 = vmatprep.subr.mxu0 0.0
    %1331 = vmatpush1.msra.mxu0 %v338
    %1332 = vmatprep.subr.mxu0 0.0
    %1333 = vmatpush1.msra.mxu0 %v337
    %1334 = vmatprep.subr.mxu0 0.0
    %1335 = vmatpush1.msra.mxu0 %v336
    %1336 = vmatprep.subr.mxu0 0.0
    %1337 = vmatpush1.msra.mxu0 %v335
    %1338 = vmatprep.subr.mxu0 0.0
    %1339 = vmatpush1.msra.mxu0 %v334
    %1340 = vmatprep.subr.mxu0 0.0
    %1341 = vmatpush1.msra.mxu0 %v333
    %1342 = vmatprep.subr.mxu0 0.0
    %1343 = vmatpush1.msra.mxu0 %v332
    %1344 = vmatprep.subr.mxu0 0.0
    %1345 = vmatpush1.msra.mxu0 %v331
    %1346 = vmatprep.subr.mxu0 0.0
    %1347 = vmatpush2.msra.mxu0 0.0
    %1348 = vmatprep.subr.mxu0 0.0
    %1349 = vmatpush2.msra.mxu0 0.0
    %1350 = vmatprep.subr.mxu0 0.0
    %1351 = vmatpush2.msra.mxu0 0.0
    %1352 = vmatprep.subr.mxu0 0.0
    %1353 = vmatpush2.msra.mxu0 0.0
    %1354 = vmatprep.subr.mxu0 0.0
    %1355 = vmatpush2.msra.mxu0 0.0
    %1356 = vmatprep.subr.mxu0 0.0
    %1357 = vmatpush2.msra.mxu0 0.0
    %1358 = vmatprep.subr.mxu0 0.0
    %1359 = vmatpush2.msra.mxu0 0.0
    %1360 = vmatprep.subr.mxu0 0.0
    %1361 = vmatpush2.msra.mxu0 0.0
    %1362 = vmatprep.subr.mxu0 0.0
    %1363 = vmatpush2.msra.mxu0 0.0
    %1364 = vmatprep.subr.mxu0 0.0
    %1365 = vmatpush2.msra.mxu0 0.0
    %1366 = vmatprep.subr.mxu0 0.0
    %1367 = vmatpush2.msra.mxu0 0.0
    %1368 = vmatprep.subr.mxu0 0.0
    %1369 = vmatpush2.msra.mxu0 0.0
    %1370 = vmatprep.subr.mxu0 0.0
    %1371 = vmatpush2.msra.mxu0 0.0
    %1372 = vmatprep.subr.mxu0 0.0
    %1373 = vmatpush2.msra.mxu0 0.0
    %1374 = vmatprep.subr.mxu0 0.0
    %1375 = vmatpush2.msra.mxu0 0.0
    %1376 = vmatprep.subr.mxu0 0.0
    %1377 = vmatpush2.msra.mxu0 0.0
    %1378 = vmatprep.mubr.f32.mxu0 0.0
    %1379 = vmatmul.mubr.f32.gmra.mxu0 %v1312
    %v1380 = vpop.f32.mrf.mxu0
    %v1381 = vadd.f32 0.0, %v1380
    %v1382 = vpop.f32.mrf.mxu0
    %1383 = vdwg.mxu0
    %v1385 = vrot.slane %v1381, 6
    %v1386 = vrot.slane %v1381, 7
    %v1389 = vadd.f32 %v309, %v1385
    %v1390 = vadd.f32 %v314, %v1386
    %v1391 = vtanh.pop %v1389
    %v1392 = vtanh.pop %v1390
    %vm1393 = vcmask 780290
    %1394 = vst.msk [vmem:[#allocation2] sm:$0x4] %vm1393, %v1391
    %1395 = vst.msk [vmem:[#allocation2 + $0x8] sm:$0x4] %vm1393, %v1392
    %v1398 = vrot.slane %v1391, 2
    %v1399 = vrot.slane %v1392, 1
    %v1400 = vsel %vm431, %v1399, %v1398
    %v1401 = vsel %vm133, %v1400, 0
    %1403 = vmatprep.subr.mxu0 0.0
    %1404 = vmatpush1.msra.mxu0 0.0
    %1405 = vmatprep.subr.mxu0 0.0
    %1406 = vmatpush1.msra.mxu0 0.0
    %1407 = vmatprep.subr.mxu0 0.0
    %1408 = vmatpush1.msra.mxu0 0.0
    %1409 = vmatprep.subr.mxu0 0.0
    %1410 = vmatpush1.msra.mxu0 0.0
    %1411 = vmatprep.subr.mxu0 0.0
    %1412 = vmatpush1.msra.mxu0 %v342
    %1413 = vmatprep.subr.mxu0 0.0
    %1414 = vmatpush1.msra.mxu0 %v341
    %1415 = vmatprep.subr.mxu0 0.0
    %1416 = vmatpush1.msra.mxu0 %v340
    %1417 = vmatprep.subr.mxu0 0.0
    %1418 = vmatpush1.msra.mxu0 %v339
    %1419 = vmatprep.subr.mxu0 0.0
    %1420 = vmatpush1.msra.mxu0 %v338
    %1421 = vmatprep.subr.mxu0 0.0
    %1422 = vmatpush1.msra.mxu0 %v337
    %1423 = vmatprep.subr.mxu0 0.0
    %1424 = vmatpush1.msra.mxu0 %v336
    %1425 = vmatprep.subr.mxu0 0.0
    %1426 = vmatpush1.msra.mxu0 %v335
    %1427 = vmatprep.subr.mxu0 0.0
    %1428 = vmatpush1.msra.mxu0 %v334
    %1429 = vmatprep.subr.mxu0 0.0
    %1430 = vmatpush1.msra.mxu0 %v333
    %1431 = vmatprep.subr.mxu0 0.0
    %1432 = vmatpush1.msra.mxu0 %v332
    %1433 = vmatprep.subr.mxu0 0.0
    %1434 = vmatpush1.msra.mxu0 %v331
    %1435 = vmatprep.subr.mxu0 0.0
    %1436 = vmatpush2.msra.mxu0 0.0
    %1437 = vmatprep.subr.mxu0 0.0
    %1438 = vmatpush2.msra.mxu0 0.0
    %1439 = vmatprep.subr.mxu0 0.0
    %1440 = vmatpush2.msra.mxu0 0.0
    %1441 = vmatprep.subr.mxu0 0.0
    %1442 = vmatpush2.msra.mxu0 0.0
    %1443 = vmatprep.subr.mxu0 0.0
    %1444 = vmatpush2.msra.mxu0 0.0
    %1445 = vmatprep.subr.mxu0 0.0
    %1446 = vmatpush2.msra.mxu0 0.0
    %1447 = vmatprep.subr.mxu0 0.0
    %1448 = vmatpush2.msra.mxu0 0.0
    %1449 = vmatprep.subr.mxu0 0.0
    %1450 = vmatpush2.msra.mxu0 0.0
    %1451 = vmatprep.subr.mxu0 0.0
    %1452 = vmatpush2.msra.mxu0 0.0
    %1453 = vmatprep.subr.mxu0 0.0
    %1454 = vmatpush2.msra.mxu0 0.0
    %1455 = vmatprep.subr.mxu0 0.0
    %1456 = vmatpush2.msra.mxu0 0.0
    %1457 = vmatprep.subr.mxu0 0.0
    %1458 = vmatpush2.msra.mxu0 0.0
    %1459 = vmatprep.subr.mxu0 0.0
    %1460 = vmatpush2.msra.mxu0 0.0
    %1461 = vmatprep.subr.mxu0 0.0
    %1462 = vmatpush2.msra.mxu0 0.0
    %1463 = vmatprep.subr.mxu0 0.0
    %1464 = vmatpush2.msra.mxu0 0.0
    %1465 = vmatprep.subr.mxu0 0.0
    %1466 = vmatpush2.msra.mxu0 0.0
    %1467 = vmatprep.mubr.f32.mxu0 0.0
    %1468 = vmatmul.mubr.f32.gmra.mxu0 %v1401
    %v1469 = vpop.f32.mrf.mxu0
    %v1470 = vadd.f32 0.0, %v1469
    %v1471 = vpop.f32.mrf.mxu0
    %1472 = vdwg.mxu0
    %v1474 = vrot.slane %v1470, 5
    %v1475 = vrot.slane %v1470, 6
    %v1478 = vadd.f32 %v309, %v1474
    %v1479 = vadd.f32 %v314, %v1475
    %v1480 = vtanh.pop %v1478
    %v1481 = vtanh.pop %v1479
    %vm1482 = vcmask 781315
    %1483 = vst.msk [vmem:[#allocation2] sm:$0x8] %vm1482, %v1480
    %1484 = vst.msk [vmem:[#allocation2 + $0x8] sm:$0x8] %vm1482, %v1481
    %v1487 = vrot.slane %v1480, 3
    %v1488 = vrot.slane %v1481, 2
    %v1489 = vsel %vm431, %v1488, %v1487
    %v1490 = vsel %vm133, %v1489, 0
    %1492 = vmatprep.subr.mxu0 0.0
    %1493 = vmatpush1.msra.mxu0 0.0
    %1494 = vmatprep.subr.mxu0 0.0
    %1495 = vmatpush1.msra.mxu0 0.0
    %1496 = vmatprep.subr.mxu0 0.0
    %1497 = vmatpush1.msra.mxu0 0.0
    %1498 = vmatprep.subr.mxu0 0.0
    %1499 = vmatpush1.msra.mxu0 0.0
    %1500 = vmatprep.subr.mxu0 0.0
    %1501 = vmatpush1.msra.mxu0 %v342
    %1502 = vmatprep.subr.mxu0 0.0
    %1503 = vmatpush1.msra.mxu0 %v341
    %1504 = vmatprep.subr.mxu0 0.0
    %1505 = vmatpush1.msra.mxu0 %v340
    %1506 = vmatprep.subr.mxu0 0.0
    %1507 = vmatpush1.msra.mxu0 %v339
    %1508 = vmatprep.subr.mxu0 0.0
    %1509 = vmatpush1.msra.mxu0 %v338
    %1510 = vmatprep.subr.mxu0 0.0
    %1511 = vmatpush1.msra.mxu0 %v337
    %1512 = vmatprep.subr.mxu0 0.0
    %1513 = vmatpush1.msra.mxu0 %v336
    %1514 = vmatprep.subr.mxu0 0.0
    %1515 = vmatpush1.msra.mxu0 %v335
    %1516 = vmatprep.subr.mxu0 0.0
    %1517 = vmatpush1.msra.mxu0 %v334
    %1518 = vmatprep.subr.mxu0 0.0
    %1519 = vmatpush1.msra.mxu0 %v333
    %1520 = vmatprep.subr.mxu0 0.0
    %1521 = vmatpush1.msra.mxu0 %v332
    %1522 = vmatprep.subr.mxu0 0.0
    %1523 = vmatpush1.msra.mxu0 %v331
    %1524 = vmatprep.subr.mxu0 0.0
    %1525 = vmatpush2.msra.mxu0 0.0
    %1526 = vmatprep.subr.mxu0 0.0
    %1527 = vmatpush2.msra.mxu0 0.0
    %1528 = vmatprep.subr.mxu0 0.0
    %1529 = vmatpush2.msra.mxu0 0.0
    %1530 = vmatprep.subr.mxu0 0.0
    %1531 = vmatpush2.msra.mxu0 0.0
    %1532 = vmatprep.subr.mxu0 0.0
    %1533 = vmatpush2.msra.mxu0 0.0
    %1534 = vmatprep.subr.mxu0 0.0
    %1535 = vmatpush2.msra.mxu0 0.0
    %1536 = vmatprep.subr.mxu0 0.0
    %1537 = vmatpush2.msra.mxu0 0.0
    %1538 = vmatprep.subr.mxu0 0.0
    %1539 = vmatpush2.msra.mxu0 0.0
    %1540 = vmatprep.subr.mxu0 0.0
    %1541 = vmatpush2.msra.mxu0 0.0
    %1542 = vmatprep.subr.mxu0 0.0
    %1543 = vmatpush2.msra.mxu0 0.0
    %1544 = vmatprep.subr.mxu0 0.0
    %1545 = vmatpush2.msra.mxu0 0.0
    %1546 = vmatprep.subr.mxu0 0.0
    %1547 = vmatpush2.msra.mxu0 0.0
    %1548 = vmatprep.subr.mxu0 0.0
    %1549 = vmatpush2.msra.mxu0 0.0
    %1550 = vmatprep.subr.mxu0 0.0
    %1551 = vmatpush2.msra.mxu0 0.0
    %1552 = vmatprep.subr.mxu0 0.0
    %1553 = vmatpush2.msra.mxu0 0.0
    %1554 = vmatprep.subr.mxu0 0.0
    %1555 = vmatpush2.msra.mxu0 0.0
    %1556 = vmatprep.mubr.f32.mxu0 0.0
    %1557 = vmatmul.mubr.f32.gmra.mxu0 %v1490
    %v1558 = vpop.f32.mrf.mxu0
    %v1559 = vadd.f32 0.0, %v1558
    %v1560 = vpop.f32.mrf.mxu0
    %1561 = vdwg.mxu0
    %v1563 = vrot.slane %v1559, 4
    %v1564 = vrot.slane %v1559, 5
    %v1567 = vadd.f32 %v309, %v1563
    %v1568 = vadd.f32 %v314, %v1564
    %v1569 = vtanh.pop %v1567
    %v1570 = vtanh.pop %v1568
    %vm1571 = vcmask 782340
    %1572 = vst.msk [vmem:[#allocation2] sm:$0x10] %vm1571, %v1569
    %1573 = vst.msk [vmem:[#allocation2 + $0x8] sm:$0x10] %vm1571, %v1570
    %v1576 = vrot.slane %v1569, 4
    %v1577 = vrot.slane %v1570, 3
    %v1578 = vsel %vm431, %v1577, %v1576
    %v1579 = vsel %vm133, %v1578, 0
    %1581 = vmatprep.subr.mxu0 0.0
    %1582 = vmatpush1.msra.mxu0 0.0
    %1583 = vmatprep.subr.mxu0 0.0
    %1584 = vmatpush1.msra.mxu0 0.0
    %1585 = vmatprep.subr.mxu0 0.0
    %1586 = vmatpush1.msra.mxu0 0.0
    %1587 = vmatprep.subr.mxu0 0.0
    %1588 = vmatpush1.msra.mxu0 0.0
    %1589 = vmatprep.subr.mxu0 0.0
    %1590 = vmatpush1.msra.mxu0 %v342
    %1591 = vmatprep.subr.mxu0 0.0
    %1592 = vmatpush1.msra.mxu0 %v341
    %1593 = vmatprep.subr.mxu0 0.0
    %1594 = vmatpush1.msra.mxu0 %v340
    %1595 = vmatprep.subr.mxu0 0.0
    %1596 = vmatpush1.msra.mxu0 %v339
    %1597 = vmatprep.subr.mxu0 0.0
    %1598 = vmatpush1.msra.mxu0 %v338
    %1599 = vmatprep.subr.mxu0 0.0
    %1600 = vmatpush1.msra.mxu0 %v337
    %1601 = vmatprep.subr.mxu0 0.0
    %1602 = vmatpush1.msra.mxu0 %v336
    %1603 = vmatprep.subr.mxu0 0.0
    %1604 = vmatpush1.msra.mxu0 %v335
    %1605 = vmatprep.subr.mxu0 0.0
    %1606 = vmatpush1.msra.mxu0 %v334
    %1607 = vmatprep.subr.mxu0 0.0
    %1608 = vmatpush1.msra.mxu0 %v333
    %1609 = vmatprep.subr.mxu0 0.0
    %1610 = vmatpush1.msra.mxu0 %v332
    %1611 = vmatprep.subr.mxu0 0.0
    %1612 = vmatpush1.msra.mxu0 %v331
    %1613 = vmatprep.subr.mxu0 0.0
    %1614 = vmatpush2.msra.mxu0 0.0
    %1615 = vmatprep.subr.mxu0 0.0
    %1616 = vmatpush2.msra.mxu0 0.0
    %1617 = vmatprep.subr.mxu0 0.0
    %1618 = vmatpush2.msra.mxu0 0.0
    %1619 = vmatprep.subr.mxu0 0.0
    %1620 = vmatpush2.msra.mxu0 0.0
    %1621 = vmatprep.subr.mxu0 0.0
    %1622 = vmatpush2.msra.mxu0 0.0
    %1623 = vmatprep.subr.mxu0 0.0
    %1624 = vmatpush2.msra.mxu0 0.0
    %1625 = vmatprep.subr.mxu0 0.0
    %1626 = vmatpush2.msra.mxu0 0.0
    %1627 = vmatprep.subr.mxu0 0.0
    %1628 = vmatpush2.msra.mxu0 0.0
    %1629 = vmatprep.subr.mxu0 0.0
    %1630 = vmatpush2.msra.mxu0 0.0
    %1631 = vmatprep.subr.mxu0 0.0
    %1632 = vmatpush2.msra.mxu0 0.0
    %1633 = vmatprep.subr.mxu0 0.0
    %1634 = vmatpush2.msra.mxu0 0.0
    %1635 = vmatprep.subr.mxu0 0.0
    %1636 = vmatpush2.msra.mxu0 0.0
    %1637 = vmatprep.subr.mxu0 0.0
    %1638 = vmatpush2.msra.mxu0 0.0
    %1639 = vmatprep.subr.mxu0 0.0
    %1640 = vmatpush2.msra.mxu0 0.0
    %1641 = vmatprep.subr.mxu0 0.0
    %1642 = vmatpush2.msra.mxu0 0.0
    %1643 = vmatprep.subr.mxu0 0.0
    %1644 = vmatpush2.msra.mxu0 0.0
    %1645 = vmatprep.mubr.f32.mxu0 0.0
    %1646 = vmatmul.mubr.f32.gmra.mxu0 %v1579
    %v1647 = vpop.f32.mrf.mxu0
    %v1648 = vadd.f32 0.0, %v1647
    %v1649 = vpop.f32.mrf.mxu0
    %1650 = vdwg.mxu0
    %v1652 = vrot.slane %v1648, 3
    %v1653 = vrot.slane %v1648, 4
    %v1656 = vadd.f32 %v309, %v1652
    %v1657 = vadd.f32 %v314, %v1653
    %v1658 = vtanh.pop %v1656
    %v1659 = vtanh.pop %v1657
    %vm1660 = vcmask 783365
    %1661 = vst.msk [vmem:[#allocation2] sm:$0x20] %vm1660, %v1658
    %1662 = vst.msk [vmem:[#allocation2 + $0x8] sm:$0x20] %vm1660, %v1659
    %v1665 = vrot.slane %v1658, 5
    %v1666 = vrot.slane %v1659, 4
    %v1667 = vsel %vm431, %v1666, %v1665
    %v1668 = vsel %vm133, %v1667, 0
    %1670 = vmatprep.subr.mxu0 0.0
    %1671 = vmatpush1.msra.mxu0 0.0
    %1672 = vmatprep.subr.mxu0 0.0
    %1673 = vmatpush1.msra.mxu0 0.0
    %1674 = vmatprep.subr.mxu0 0.0
    %1675 = vmatpush1.msra.mxu0 0.0
    %1676 = vmatprep.subr.mxu0 0.0
    %1677 = vmatpush1.msra.mxu0 0.0
    %1678 = vmatprep.subr.mxu0 0.0
    %1679 = vmatpush1.msra.mxu0 %v342
    %1680 = vmatprep.subr.mxu0 0.0
    %1681 = vmatpush1.msra.mxu0 %v341
    %1682 = vmatprep.subr.mxu0 0.0
    %1683 = vmatpush1.msra.mxu0 %v340
    %1684 = vmatprep.subr.mxu0 0.0
    %1685 = vmatpush1.msra.mxu0 %v339
    %1686 = vmatprep.subr.mxu0 0.0
    %1687 = vmatpush1.msra.mxu0 %v338
    %1688 = vmatprep.subr.mxu0 0.0
    %1689 = vmatpush1.msra.mxu0 %v337
    %1690 = vmatprep.subr.mxu0 0.0
    %1691 = vmatpush1.msra.mxu0 %v336
    %1692 = vmatprep.subr.mxu0 0.0
    %1693 = vmatpush1.msra.mxu0 %v335
    %1694 = vmatprep.subr.mxu0 0.0
    %1695 = vmatpush1.msra.mxu0 %v334
    %1696 = vmatprep.subr.mxu0 0.0
    %1697 = vmatpush1.msra.mxu0 %v333
    %1698 = vmatprep.subr.mxu0 0.0
    %1699 = vmatpush1.msra.mxu0 %v332
    %1700 = vmatprep.subr.mxu0 0.0
    %1701 = vmatpush1.msra.mxu0 %v331
    %1702 = vmatprep.subr.mxu0 0.0
    %1703 = vmatpush2.msra.mxu0 0.0
    %1704 = vmatprep.subr.mxu0 0.0
    %1705 = vmatpush2.msra.mxu0 0.0
    %1706 = vmatprep.subr.mxu0 0.0
    %1707 = vmatpush2.msra.mxu0 0.0
    %1708 = vmatprep.subr.mxu0 0.0
    %1709 = vmatpush2.msra.mxu0 0.0
    %1710 = vmatprep.subr.mxu0 0.0
    %1711 = vmatpush2.msra.mxu0 0.0
    %1712 = vmatprep.subr.mxu0 0.0
    %1713 = vmatpush2.msra.mxu0 0.0
    %1714 = vmatprep.subr.mxu0 0.0
    %1715 = vmatpush2.msra.mxu0 0.0
    %1716 = vmatprep.subr.mxu0 0.0
    %1717 = vmatpush2.msra.mxu0 0.0
    %1718 = vmatprep.subr.mxu0 0.0
    %1719 = vmatpush2.msra.mxu0 0.0
    %1720 = vmatprep.subr.mxu0 0.0
    %1721 = vmatpush2.msra.mxu0 0.0
    %1722 = vmatprep.subr.mxu0 0.0
    %1723 = vmatpush2.msra.mxu0 0.0
    %1724 = vmatprep.subr.mxu0 0.0
    %1725 = vmatpush2.msra.mxu0 0.0
    %1726 = vmatprep.subr.mxu0 0.0
    %1727 = vmatpush2.msra.mxu0 0.0
    %1728 = vmatprep.subr.mxu0 0.0
    %1729 = vmatpush2.msra.mxu0 0.0
    %1730 = vmatprep.subr.mxu0 0.0
    %1731 = vmatpush2.msra.mxu0 0.0
    %1732 = vmatprep.subr.mxu0 0.0
    %1733 = vmatpush2.msra.mxu0 0.0
    %1734 = vmatprep.mubr.f32.mxu0 0.0
    %1735 = vmatmul.mubr.f32.gmra.mxu0 %v1668
    %v1736 = vpop.f32.mrf.mxu0
    %v1737 = vadd.f32 0.0, %v1736
    %v1738 = vpop.f32.mrf.mxu0
    %1739 = vdwg.mxu0
    %v1741 = vrot.slane %v1737, 2
    %v1742 = vrot.slane %v1737, 3
    %v1745 = vadd.f32 %v309, %v1741
    %v1746 = vadd.f32 %v314, %v1742
    %v1747 = vtanh.pop %v1745
    %v1748 = vtanh.pop %v1746
    %vm1749 = vcmask 784390
    %1750 = vst.msk [vmem:[#allocation2] sm:$0x40] %vm1749, %v1747
    %1751 = vst.msk [vmem:[#allocation2 + $0x8] sm:$0x40] %vm1749, %v1748
    %v1754 = vrot.slane %v1747, 6
    %v1755 = vrot.slane %v1748, 5
    %v1756 = vsel %vm431, %v1755, %v1754
    %v1757 = vsel %vm133, %v1756, 0
    %1759 = vmatprep.subr.mxu0 0.0
    %1760 = vmatpush1.msra.mxu0 0.0
    %1761 = vmatprep.subr.mxu0 0.0
    %1762 = vmatpush1.msra.mxu0 0.0
    %1763 = vmatprep.subr.mxu0 0.0
    %1764 = vmatpush1.msra.mxu0 0.0
    %1765 = vmatprep.subr.mxu0 0.0
    %1766 = vmatpush1.msra.mxu0 0.0
    %1767 = vmatprep.subr.mxu0 0.0
    %1768 = vmatpush1.msra.mxu0 %v342
    %1769 = vmatprep.subr.mxu0 0.0
    %1770 = vmatpush1.msra.mxu0 %v341
    %1771 = vmatprep.subr.mxu0 0.0
    %1772 = vmatpush1.msra.mxu0 %v340
    %1773 = vmatprep.subr.mxu0 0.0
    %1774 = vmatpush1.msra.mxu0 %v339
    %1775 = vmatprep.subr.mxu0 0.0
    %1776 = vmatpush1.msra.mxu0 %v338
    %1777 = vmatprep.subr.mxu0 0.0
    %1778 = vmatpush1.msra.mxu0 %v337
    %1779 = vmatprep.subr.mxu0 0.0
    %1780 = vmatpush1.msra.mxu0 %v336
    %1781 = vmatprep.subr.mxu0 0.0
    %1782 = vmatpush1.msra.mxu0 %v335
    %1783 = vmatprep.subr.mxu0 0.0
    %1784 = vmatpush1.msra.mxu0 %v334
    %1785 = vmatprep.subr.mxu0 0.0
    %1786 = vmatpush1.msra.mxu0 %v333
    %1787 = vmatprep.subr.mxu0 0.0
    %1788 = vmatpush1.msra.mxu0 %v332
    %1789 = vmatprep.subr.mxu0 0.0
    %1790 = vmatpush1.msra.mxu0 %v331
    %1791 = vmatprep.subr.mxu0 0.0
    %1792 = vmatpush2.msra.mxu0 0.0
    %1793 = vmatprep.subr.mxu0 0.0
    %1794 = vmatpush2.msra.mxu0 0.0
    %1795 = vmatprep.subr.mxu0 0.0
    %1796 = vmatpush2.msra.mxu0 0.0
    %1797 = vmatprep.subr.mxu0 0.0
    %1798 = vmatpush2.msra.mxu0 0.0
    %1799 = vmatprep.subr.mxu0 0.0
    %1800 = vmatpush2.msra.mxu0 0.0
    %1801 = vmatprep.subr.mxu0 0.0
    %1802 = vmatpush2.msra.mxu0 0.0
    %1803 = vmatprep.subr.mxu0 0.0
    %1804 = vmatpush2.msra.mxu0 0.0
    %1805 = vmatprep.subr.mxu0 0.0
    %1806 = vmatpush2.msra.mxu0 0.0
    %1807 = vmatprep.subr.mxu0 0.0
    %1808 = vmatpush2.msra.mxu0 0.0
    %1809 = vmatprep.subr.mxu0 0.0
    %1810 = vmatpush2.msra.mxu0 0.0
    %1811 = vmatprep.subr.mxu0 0.0
    %1812 = vmatpush2.msra.mxu0 0.0
    %1813 = vmatprep.subr.mxu0 0.0
    %1814 = vmatpush2.msra.mxu0 0.0
    %1815 = vmatprep.subr.mxu0 0.0
    %1816 = vmatpush2.msra.mxu0 0.0
    %1817 = vmatprep.subr.mxu0 0.0
    %1818 = vmatpush2.msra.mxu0 0.0
    %1819 = vmatprep.subr.mxu0 0.0
    %1820 = vmatpush2.msra.mxu0 0.0
    %1821 = vmatprep.subr.mxu0 0.0
    %1822 = vmatpush2.msra.mxu0 0.0
    %1823 = vmatprep.mubr.f32.mxu0 0.0
    %1824 = vmatmul.mubr.f32.gmra.mxu0 %v1757
    %v1825 = vpop.f32.mrf.mxu0
    %v1826 = vadd.f32 0.0, %v1825
    %v1827 = vpop.f32.mrf.mxu0
    %1828 = vdwg.mxu0
    %v1830 = vrot.slane %v1826, 1
    %v1831 = vrot.slane %v1826, 2
    %v1834 = vadd.f32 %v309, %v1830
    %v1835 = vadd.f32 %v314, %v1831
    %v1836 = vtanh.pop %v1834
    %v1837 = vtanh.pop %v1835
    %vm1838 = vcmask 785415
    %1839 = vst.msk [vmem:[#allocation2] sm:$0x80] %vm1838, %v1836
    %1840 = vst.msk [vmem:[#allocation2 + $0x8] sm:$0x80] %vm1838, %v1837
    %v1841 = vld [vmem:[#allocation2] sm:$0xff]
    %v1842 = vld [vmem:[#allocation2 + $0x8] sm:$0xff]
    %v1843 = vld [vmem:[#allocation11] sm:$0xff]
    %v1844 = vld [vmem:[#allocation11 + $0x8] sm:$0xff]
    %v1845 = vld [vmem:[#allocation11 + $0x10] sm:$0xff]
    %v1846 = vld [vmem:[#allocation11 + $0x18] sm:$0xff]
    %v1847 = vld [vmem:[#allocation11 + $0x20] sm:$0xff]
    %v1848 = vld [vmem:[#allocation11 + $0x28] sm:$0xff]
    %v1849 = vld [vmem:[#allocation11 + $0x30] sm:$0xff]
    %v1850 = vld [vmem:[#allocation11 + $0x38] sm:$0xff]
    %v1851 = vld [vmem:[#allocation11 + $0x40] sm:$0xff]
    %v1852 = vld [vmem:[#allocation11 + $0x48] sm:$0xff]
    %v1853 = vld [vmem:[#allocation11 + $0x50] sm:$0xff]
    %v1854 = vld [vmem:[#allocation11 + $0x58] sm:$0xff]
    %v1855 = vld [vmem:[#allocation11 + $0x60] sm:$0xff]
    %v1856 = vld [vmem:[#allocation11 + $0x68] sm:$0xff]
    %v1857 = vld [vmem:[#allocation11 + $0x70] sm:$0xff]
    %v1858 = vld [vmem:[#allocation11 + $0x78] sm:$0xff]
    %v1859 = vld [vmem:[#allocation11 + $0x80] sm:$0xff]
    %v1860 = vld [vmem:[#allocation11 + $0x88] sm:$0xff]
    %v1861 = vld [vmem:[#allocation11 + $0x90] sm:$0xff]
    %v1862 = vld [vmem:[#allocation11 + $0x98] sm:$0xff]
    %v1863 = vld [vmem:[#allocation11 + $0xa0] sm:$0xff]
    %v1864 = vld [vmem:[#allocation11 + $0xa8] sm:$0xff]
    %v1865 = vld [vmem:[#allocation11 + $0xb0] sm:$0xff]
    %v1866 = vld [vmem:[#allocation11 + $0xb8] sm:$0xff]
    %v1867 = vld [vmem:[#allocation11 + $0xc0] sm:$0xff]
    %v1868 = vld [vmem:[#allocation11 + $0xc8] sm:$0xff]
    %v1869 = vld [vmem:[#allocation11 + $0xd0] sm:$0xff]
    %v1870 = vld [vmem:[#allocation11 + $0xd8] sm:$0xff]
    %v1871 = vld [vmem:[#allocation11 + $0xe0] sm:$0xff]
    %v1872 = vld [vmem:[#allocation11 + $0xe8] sm:$0xff]
    %v1873 = vld [vmem:[#allocation11 + $0xf0] sm:$0xff]
    %v1874 = vld [vmem:[#allocation11 + $0xf8] sm:$0xff]
    %v1875 = vld [vmem:[#allocation11 + $0x100] sm:$0xff]
    %v1876 = vld [vmem:[#allocation11 + $0x108] sm:$0xff]
    %v1877 = vld [vmem:[#allocation11 + $0x110] sm:$0xff]
    %v1878 = vld [vmem:[#allocation11 + $0x118] sm:$0xff]
    %v1879 = vld [vmem:[%s11] sm:$0x7]
    %v1881 = vlaneseq
    %v1882 = vshrl.u32 %v1881, 7
    %v1883 = vsub.s32 0, %v1882
    %v1884 = vrot.slane %v1879, %v1883
    %v1885 = vlaneseq
    %v1886 = vshrl.u32 %v1885, 7
    %v1887 = vsub.s32 1, %v1886
    %v1888 = vrot.slane %v1879, %v1887
    %v1889 = vlaneseq
    %v1890 = vshrl.u32 %v1889, 7
    %v1891 = vsub.s32 2, %v1890
    %v1892 = vrot.slane %v1879, %v1891
    %v1897 = vsel %vm133, %v1841, 0
    %v1900 = vsel %vm133, %v1842, 0
    %1902 = vmatprep.subr.mxu0 0.0
    %1903 = vmatpush1.msra.mxu0 0.0
    %1904 = vmatprep.subr.mxu0 0.0
    %1905 = vmatpush1.msra.mxu0 0.0
    %1906 = vmatprep.subr.mxu0 0.0
    %1907 = vmatpush1.msra.mxu0 0.0
    %1908 = vmatprep.subr.mxu0 0.0
    %1909 = vmatpush1.msra.mxu0 0.0
    %1910 = vmatprep.subr.mxu0 %v1877
    %1911 = vmatpush1.msra.mxu0 %v1876
    %1912 = vmatprep.subr.mxu0 %v1874
    %1913 = vmatpush1.msra.mxu0 %v1873
    %1914 = vmatprep.subr.mxu0 %v1871
    %1915 = vmatpush1.msra.mxu0 %v1870
    %1916 = vmatprep.subr.mxu0 %v1868
    %1917 = vmatpush1.msra.mxu0 %v1867
    %1918 = vmatprep.subr.mxu0 %v1865
    %1919 = vmatpush1.msra.mxu0 %v1864
    %1920 = vmatprep.subr.mxu0 %v1862
    %1921 = vmatpush1.msra.mxu0 %v1861
    %1922 = vmatprep.subr.mxu0 %v1859
    %1923 = vmatpush1.msra.mxu0 %v1858
    %1924 = vmatprep.subr.mxu0 %v1856
    %1925 = vmatpush1.msra.mxu0 %v1855
    %1926 = vmatprep.subr.mxu0 %v1853
    %1927 = vmatpush1.msra.mxu0 %v1852
    %1928 = vmatprep.subr.mxu0 %v1850
    %1929 = vmatpush1.msra.mxu0 %v1849
    %1930 = vmatprep.subr.mxu0 %v1847
    %1931 = vmatpush1.msra.mxu0 %v1846
    %1932 = vmatprep.subr.mxu0 %v1844
    %1933 = vmatpush1.msra.mxu0 %v1843
    %1934 = vmatprep.subr.mxu0 0.0
    %1935 = vmatpush2.msra.mxu0 0.0
    %1936 = vmatprep.subr.mxu0 0.0
    %1937 = vmatpush2.msra.mxu0 0.0
    %1938 = vmatprep.subr.mxu0 0.0
    %1939 = vmatpush2.msra.mxu0 0.0
    %1940 = vmatprep.subr.mxu0 0.0
    %1941 = vmatpush2.msra.mxu0 0.0
    %1942 = vmatprep.subr.mxu0 0.0
    %1943 = vmatpush2.msra.mxu0 0.0
    %1944 = vmatprep.subr.mxu0 0.0
    %1945 = vmatpush2.msra.mxu0 0.0
    %1946 = vmatprep.subr.mxu0 0.0
    %1947 = vmatpush2.msra.mxu0 0.0
    %1948 = vmatprep.subr.mxu0 0.0
    %1949 = vmatpush2.msra.mxu0 0.0
    %1950 = vmatprep.subr.mxu0 0.0
    %1951 = vmatpush2.msra.mxu0 0.0
    %1952 = vmatprep.subr.mxu0 0.0
    %1953 = vmatpush2.msra.mxu0 0.0
    %1954 = vmatprep.subr.mxu0 0.0
    %1955 = vmatpush2.msra.mxu0 0.0
    %1956 = vmatprep.subr.mxu0 0.0
    %1957 = vmatpush2.msra.mxu0 0.0
    %1958 = vmatprep.subr.mxu0 0.0
    %1959 = vmatpush2.msra.mxu0 0.0
    %1960 = vmatprep.subr.mxu0 0.0
    %1961 = vmatpush2.msra.mxu0 0.0
    %1962 = vmatprep.subr.mxu0 0.0
    %1963 = vmatpush2.msra.mxu0 0.0
    %1964 = vmatprep.subr.mxu0 0.0
    %1965 = vmatpush2.msra.mxu0 0.0
    %1966 = vmatprep.mubr.f32.mxu0 0.0
    %1967 = vmatmul.mubr.f32.gmra.mxu0 %v1897
    %v1968 = vpop.f32.mrf.mxu0
    %v1969 = vadd.f32 %v1884, %v1968
    %v1970 = vpop.f32.mrf.mxu0
    %v1971 = vadd.f32 %v1888, %v1970
    %1972 = vmatprep.mubr.f32.mxu0 0.0
    %1973 = vmatmul.mubr.f32.gmra.mxu0 %v1900
    %v1974 = vpop.f32.mrf.mxu0
    %v1975 = vadd.f32 %v1884, %v1974
    %v1976 = vpop.f32.mrf.mxu0
    %v1977 = vadd.f32 %v1888, %v1976
    %1978 = vdwg.mxu0
    %1979 = vmatprep.subr.mxu0 0.0
    %1980 = vmatpush1.msra.mxu0 0.0
    %1981 = vmatprep.subr.mxu0 0.0
    %1982 = vmatpush1.msra.mxu0 0.0
    %1983 = vmatprep.subr.mxu0 0.0
    %1984 = vmatpush1.msra.mxu0 0.0
    %1985 = vmatprep.subr.mxu0 0.0
    %1986 = vmatpush1.msra.mxu0 0.0
    %1987 = vmatprep.subr.mxu0 0.0
    %1988 = vmatpush1.msra.mxu0 %v1878
    %1989 = vmatprep.subr.mxu0 0.0
    %1990 = vmatpush1.msra.mxu0 %v1875
    %1991 = vmatprep.subr.mxu0 0.0
    %1992 = vmatpush1.msra.mxu0 %v1872
    %1993 = vmatprep.subr.mxu0 0.0
    %1994 = vmatpush1.msra.mxu0 %v1869
    %1995 = vmatprep.subr.mxu0 0.0
    %1996 = vmatpush1.msra.mxu0 %v1866
    %1997 = vmatprep.subr.mxu0 0.0
    %1998 = vmatpush1.msra.mxu0 %v1863
    %1999 = vmatprep.subr.mxu0 0.0
    %2000 = vmatpush1.msra.mxu0 %v1860
    %2001 = vmatprep.subr.mxu0 0.0
    %2002 = vmatpush1.msra.mxu0 %v1857
    %2003 = vmatprep.subr.mxu0 0.0
    %2004 = vmatpush1.msra.mxu0 %v1854
    %2005 = vmatprep.subr.mxu0 0.0
    %2006 = vmatpush1.msra.mxu0 %v1851
    %2007 = vmatprep.subr.mxu0 0.0
    %2008 = vmatpush1.msra.mxu0 %v1848
    %2009 = vmatprep.subr.mxu0 0.0
    %2010 = vmatpush1.msra.mxu0 %v1845
    %2011 = vmatprep.subr.mxu0 0.0
    %2012 = vmatpush2.msra.mxu0 0.0
    %2013 = vmatprep.subr.mxu0 0.0
    %2014 = vmatpush2.msra.mxu0 0.0
    %2015 = vmatprep.subr.mxu0 0.0
    %2016 = vmatpush2.msra.mxu0 0.0
    %2017 = vmatprep.subr.mxu0 0.0
    %2018 = vmatpush2.msra.mxu0 0.0
    %2019 = vmatprep.subr.mxu0 0.0
    %2020 = vmatpush2.msra.mxu0 0.0
    %2021 = vmatprep.subr.mxu0 0.0
    %2022 = vmatpush2.msra.mxu0 0.0
    %2023 = vmatprep.subr.mxu0 0.0
    %2024 = vmatpush2.msra.mxu0 0.0
    %2025 = vmatprep.subr.mxu0 0.0
    %2026 = vmatpush2.msra.mxu0 0.0
    %2027 = vmatprep.subr.mxu0 0.0
    %2028 = vmatpush2.msra.mxu0 0.0
    %2029 = vmatprep.subr.mxu0 0.0
    %2030 = vmatpush2.msra.mxu0 0.0
    %2031 = vmatprep.subr.mxu0 0.0
    %2032 = vmatpush2.msra.mxu0 0.0
    %2033 = vmatprep.subr.mxu0 0.0
    %2034 = vmatpush2.msra.mxu0 0.0
    %2035 = vmatprep.subr.mxu0 0.0
    %2036 = vmatpush2.msra.mxu0 0.0
    %2037 = vmatprep.subr.mxu0 0.0
    %2038 = vmatpush2.msra.mxu0 0.0
    %2039 = vmatprep.subr.mxu0 0.0
    %2040 = vmatpush2.msra.mxu0 0.0
    %2041 = vmatprep.subr.mxu0 0.0
    %2042 = vmatpush2.msra.mxu0 0.0
    %2043 = vmatprep.mubr.f32.mxu0 0.0
    %2044 = vmatmul.mubr.f32.gmra.mxu0 %v1897
    %v2045 = vpop.f32.mrf.mxu0
    %v2046 = vadd.f32 %v1892, %v2045
    %v2047 = vpop.f32.mrf.mxu0
    %2048 = vmatprep.mubr.f32.mxu0 0.0
    %2049 = vmatmul.mubr.f32.gmra.mxu0 %v1900
    %v2050 = vpop.f32.mrf.mxu0
    %v2051 = vadd.f32 %v1892, %v2050
    %v2052 = vpop.f32.mrf.mxu0
    %2053 = vdwg.mxu0
    %v2054 = vlaneseq
    %v2055 = vand.u32 %v2054, 127
    %2056 = vmax.xlane.f32.xlu0 %v1969
    %v2057 = vpop.xlane.xlu0 %2056
    %2058 = vmax.xlane.f32.xlu0 %v1975
    %v2059 = vpop.xlane.xlu0 %2058
    %v2060 = vsub.f32 %v1969, %v2057
    %v2061 = vsub.f32 %v1975, %v2059
    %v2062 = vmul.f32 %v2060, 1.442695
    %v2063 = vpow.pop %v2062
    %v2064 = vmul.f32 %v2061, 1.442695
    %v2065 = vpow.pop %v2064
    %2066 = vadd.xlane.f32.xlu0 %v2063
    %v2067 = vpop.xlane.xlu0 %2066
    %2068 = vadd.xlane.f32.xlu0 %v2065
    %v2069 = vpop.xlane.xlu0 %2068
    %v2070 = vlog2.pop %v2067
    %v2071 = vmul.f32 %v2070, 0.6931472
    %v2072 = vlog2.pop %v2069
    %v2073 = vmul.f32 %v2072, 0.6931472
    %v2074 = vadd.f32 %v2057, %v2071
    %v2075 = vadd.f32 %v2059, %v2073
    %v2076 = vsub.f32 %v1969, %v2074
    %v2077 = vsub.f32 %v1975, %v2075
    %2078 = vst [vmem:[#allocation12] sm:$0xff] %v2076
    %2079 = vst [vmem:[#allocation12 + $0x8] sm:$0xff] %v2077
    %v2080 = vmax.f32 %v2076, -100.0
    %v2081 = vmax.f32 %v2077, -100.0
    %v2082 = vmin.f32 %v2080, -1e-10
    %v2083 = vmin.f32 %v2081, -1e-10
    %v2084 = vld [vmem:[%s3] sm:$0xff]
    %v2085 = vld [vmem:[%s3 + $0x8] sm:$0xff]
    %2086 = vset.pattern.permute.xlu0 0
    %2087 = vperm.xlu0 %2086, %v2084
    %v2088 = vpop.permute.xlu0 %2087
    %2089 = vset.pattern.permute.xlu0 0
    %2090 = vperm.xlu0 %2089, %v2085
    %v2091 = vpop.permute.xlu0 %2090
    %vm2092 = vcmp.eq.s32.totalorder %v2055, %v2088
    %vm2093 = vcmp.eq.s32.totalorder %v2055, %v2091
    %v2094 = vsel %vm2092, %v2082, 0.0
    %v2095 = vsel %vm2093, %v2083, 0.0
    %v2096 = vadd.f32 %v2094, %v2095
    %2097 = vadd.xlane.f32.xlu0 %v2096
    %v2098 = vpop.xlane.xlu0 %2097
    %v2099 = vrot.slane %v2098, 4
    %v2100 = vadd.f32 %v2098, %v2099
    %v2101 = vrot.slane %v2100, 2
    %v2102 = vadd.f32 %v2100, %v2101
    %v2103 = vrot.slane %v2102, 1
    %v2104 = vadd.f32 %v2102, %v2103
    %s2105 = vtos %v2104
    %s2106 = ssub.f32 0.0, %s2105
    %s2107 = smul.f32 %s2106, 0.071428575
    %v2108 = vstv %s2107
    %vm2109 = vcmask 0
    %2110 = vst.msk [vmem:[%s13] sm:$0x1] %vm2109, %v2108
    %2111 = vmax.xlane.f32.xlu0 %v1971
    %v2112 = vpop.xlane.xlu0 %2111
    %2113 = vmax.xlane.f32.xlu0 %v1977
    %v2114 = vpop.xlane.xlu0 %2113
    %v2115 = vsub.f32 %v1971, %v2112
    %v2116 = vsub.f32 %v1977, %v2114
    %v2117 = vmul.f32 %v2115, 1.442695
    %v2118 = vpow.pop %v2117
    %v2119 = vmul.f32 %v2116, 1.442695
    %v2120 = vpow.pop %v2119
    %2121 = vadd.xlane.f32.xlu0 %v2118
    %v2122 = vpop.xlane.xlu0 %2121
    %2123 = vadd.xlane.f32.xlu0 %v2120
    %v2124 = vpop.xlane.xlu0 %2123
    %v2125 = vlog2.pop %v2122
    %v2126 = vmul.f32 %v2125, 0.6931472
    %v2127 = vlog2.pop %v2124
    %v2128 = vmul.f32 %v2127, 0.6931472
    %v2129 = vadd.f32 %v2112, %v2126
    %v2130 = vadd.f32 %v2114, %v2128
    %v2131 = vsub.f32 %v1971, %v2129
    %v2132 = vsub.f32 %v1977, %v2130
    %s2133 = scalar_lea.vmem [#allocation12], 16
    %2134 = vst [vmem:[%s2133] sm:$0xff] %v2131
    %2135 = vst [vmem:[%s2133 + $0x8] sm:$0xff] %v2132
    %v2136 = vmax.f32 %v2131, -100.0
    %v2137 = vmax.f32 %v2132, -100.0
    %v2138 = vmin.f32 %v2136, -1e-10
    %v2139 = vmin.f32 %v2137, -1e-10
    %s2140 = scalar_lea.vmem %s3, 16
    %v2141 = vld [vmem:[%s2140] sm:$0xff]
    %v2142 = vld [vmem:[%s2140 + $0x8] sm:$0xff]
    %2143 = vset.pattern.permute.xlu0 0
    %2144 = vperm.xlu0 %2143, %v2141
    %v2145 = vpop.permute.xlu0 %2144
    %2146 = vset.pattern.permute.xlu0 0
    %2147 = vperm.xlu0 %2146, %v2142
    %v2148 = vpop.permute.xlu0 %2147
    %vm2149 = vcmp.eq.s32.totalorder %v2055, %v2145
    %vm2150 = vcmp.eq.s32.totalorder %v2055, %v2148
    %v2151 = vsel %vm2149, %v2138, 0.0
    %v2152 = vsel %vm2150, %v2139, 0.0
    %v2153 = vadd.f32 %v2151, %v2152
    %2154 = vadd.xlane.f32.xlu0 %v2153
    %v2155 = vpop.xlane.xlu0 %2154
    %v2156 = vrot.slane %v2155, 4
    %v2157 = vadd.f32 %v2155, %v2156
    %v2158 = vrot.slane %v2157, 2
    %v2159 = vadd.f32 %v2157, %v2158
    %v2160 = vrot.slane %v2159, 1
    %v2161 = vadd.f32 %v2159, %v2160
    %s2162 = vtos %v2161
    %s2163 = ssub.f32 0.0, %s2162
    %s2164 = smul.f32 %s2163, 0.071428575
    %v2165 = vstv %s2164
    %s2166 = scalar_lea.vmem %s13, 1
    %2167 = vst.msk [vmem:[%s2166] sm:$0x1] %vm2109, %v2165
    %2168 = vmax.xlane.f32.xlu0 %v2046
    %v2169 = vpop.xlane.xlu0 %2168
    %2170 = vmax.xlane.f32.xlu0 %v2051
    %v2171 = vpop.xlane.xlu0 %2170
    %v2172 = vsub.f32 %v2046, %v2169
    %v2173 = vsub.f32 %v2051, %v2171
    %v2174 = vmul.f32 %v2172, 1.442695
    %v2175 = vpow.pop %v2174
    %v2176 = vmul.f32 %v2173, 1.442695
    %v2177 = vpow.pop %v2176
    %2178 = vadd.xlane.f32.xlu0 %v2175
    %v2179 = vpop.xlane.xlu0 %2178
    %2180 = vadd.xlane.f32.xlu0 %v2177
    %v2181 = vpop.xlane.xlu0 %2180
    %v2182 = vlog2.pop %v2179
    %v2183 = vmul.f32 %v2182, 0.6931472
    %v2184 = vlog2.pop %v2181
    %v2185 = vmul.f32 %v2184, 0.6931472
    %v2186 = vadd.f32 %v2169, %v2183
    %v2187 = vadd.f32 %v2171, %v2185
    %v2188 = vsub.f32 %v2046, %v2186
    %v2189 = vsub.f32 %v2051, %v2187
    %s2190 = scalar_lea.vmem [#allocation12], 32
    %2191 = vst [vmem:[%s2190] sm:$0xff] %v2188
    %2192 = vst [vmem:[%s2190 + $0x8] sm:$0xff] %v2189
    %v2193 = vmax.f32 %v2188, -100.0
    %v2194 = vmax.f32 %v2189, -100.0
    %v2195 = vmin.f32 %v2193, -1e-10
    %v2196 = vmin.f32 %v2194, -1e-10
    %s2197 = scalar_lea.vmem %s3, 32
    %v2198 = vld [vmem:[%s2197] sm:$0xff]
    %v2199 = vld [vmem:[%s2197 + $0x8] sm:$0xff]
    %2200 = vset.pattern.permute.xlu0 0
    %2201 = vperm.xlu0 %2200, %v2198
    %v2202 = vpop.permute.xlu0 %2201
    %2203 = vset.pattern.permute.xlu0 0
    %2204 = vperm.xlu0 %2203, %v2199
    %v2205 = vpop.permute.xlu0 %2204
    %vm2206 = vcmp.eq.s32.totalorder %v2055, %v2202
    %vm2207 = vcmp.eq.s32.totalorder %v2055, %v2205
    %v2208 = vsel %vm2206, %v2195, 0.0
    %v2209 = vsel %vm2207, %v2196, 0.0
    %v2210 = vadd.f32 %v2208, %v2209
    %2211 = vadd.xlane.f32.xlu0 %v2210
    %v2212 = vpop.xlane.xlu0 %2211
    %v2213 = vrot.slane %v2212, 4
    %v2214 = vadd.f32 %v2212, %v2213
    %v2215 = vrot.slane %v2214, 2
    %v2216 = vadd.f32 %v2214, %v2215
    %v2217 = vrot.slane %v2216, 1
    %v2218 = vadd.f32 %v2216, %v2217
    %s2219 = vtos %v2218
    %s2220 = ssub.f32 0.0, %s2219
    %s2221 = smul.f32 %s2220, 0.071428575
    %v2222 = vstv %s2221
    %s2223 = scalar_lea.vmem %s13, 2
    %2224 = vst.msk [vmem:[%s2223] sm:$0x1] %vm2109, %v2222
    // Predicated region
    $region70: #{tpu_custom_call.1} parent=1 // pred_check
      _
    $region71: #{tpu_custom_call.1} parent=1 // pred_check_branch
      %2226 = sbr.rel (0) target = $region73
    $region72: #{tpu_custom_call.1} parent=1 // pred_region
      %s2228 = ssub.s32 768, 768
      %2229 = vsyncadd [#allocation5], %s2228
      %s2230 = sshll.u32 [#allocation12], 4
      %s2231 = int_to_ptr.vmem [resolvable:$true] %s2230
      %2236 = dma.vmem_to_hbm [thread:$0]  %s2231, 768, %s12, [#allocation5], 128, 128, 8
    $region73: #{tpu_custom_call.1} parent=1 // pred_fallthru
      _
    // Predicated region
    $region74: #{tpu_custom_call.1} parent=1 // pred_check
      _
    $region75: #{tpu_custom_call.1} parent=1 // pred_check_branch
      %2238 = sbr.rel (0) target = $region77
    $region76: #{tpu_custom_call.1} parent=1 // pred_region
      _
    $region77: #{tpu_custom_call.1} parent=1 // pred_fallthru
      _
    // Predicated region
    $region78: #{tpu_custom_call.1} parent=1 // pred_check
      _
    $region79: #{tpu_custom_call.1} parent=1 // pred_check_branch
      %2240 = sbr.rel (0) target = $region81
    $region80: #{tpu_custom_call.1} parent=1 // pred_region
      %2241 = dma.done [#allocation5], 768
    $region81: #{tpu_custom_call.1} parent=1 // pred_fallthru
      _
    // Predicated region
    $region82: #{tpu_custom_call.1} parent=1 // pred_check
      _
    $region83: #{tpu_custom_call.1} parent=1 // pred_check_branch
      %2243 = sbr.rel (0) target = $region85
    $region84: #{tpu_custom_call.1} parent=1 // pred_region
      _
    $region85: #{tpu_custom_call.1} parent=1 // pred_fallthru
      _
    %2244 = vsyncpa [#allocation4], 1
    %2245 = vsyncpa [#allocation7], 1
    %2246 = vsyncpa [#allocation10], 1
    %2247 = vsyncpa [#allocation5], 1

</llo_original>
